<compile_context>
chip_gen: v5e
topology: v5e:2x2
jax: 0.10.0
libtpu: 0.0.40
codegen_flags: <defaults>
</compile_context>

<pallas_src>
import math
import functools

import jax
import jax.numpy as jnp
from jax.experimental import pallas as pl
from jax.experimental.pallas import tpu as pltpu


# ----------------------------- Pallas kernel --------------------------------

def _layer_norm(x, g, b, eps=1e-5):
    mu = jnp.mean(x, axis=-1, keepdims=True)
    xc = x - mu
    var = jnp.mean(xc * xc, axis=-1, keepdims=True)
    return xc * jax.lax.rsqrt(var + eps) * g + b


def _transformer_kernel(x_ref, pe_ref,
                        wqkv_ref, bqkv_ref, wo_ref, bo_ref,
                        g1_ref, b1_ref,
                        w1_ref, bf1_ref, w2_ref, bf2_ref,
                        g2_ref, b2_ref,
                        o_ref, x_sc, *, nhead):
    """Grid = (batch_tile n [parallel], layer l [arbitrary]).  One encoder layer per step;
    the running activation lives in the VMEM scratch x_sc across layer steps."""
    Nb, T, D = x_ref.shape
    H = nhead
    Dh = D // H
    R = Nb * T
    mm = jnp.bfloat16          # MXU operand dtype (f32 accumulation everywhere)
    f32 = jnp.float32

    layer = pl.program_id(1)

    # ---- layer 0: embed-scale + positional encoding into the carried activation ----
    @pl.when(layer == 0)
    def _():
        x0 = x_ref[...].astype(f32) * math.sqrt(D) + pe_ref[...]
        x_sc[...] = x0.reshape(R, D)          # fold batch tile into the sublane dim

    x = x_sc[...]                              # (R, D) f32

    # ---- multi-head self-attention ---------------------------------------------
    # Single lane-dense QKV projection: (R, D) @ (D, 3D).  Column order is
    # [q_h0..q_hH-1 | k_h0.. | v_h0..]; the 1/sqrt(Dh) scale is folded into the q columns.
    qkv = jnp.dot(x.astype(mm), wqkv_ref[0],
                  preferred_element_type=f32) + bqkv_ref[0]          # (R, 3D) f32
    qkv16 = qkv.astype(mm)

    # Per-head attention core (static lane slices; H is small & static -> unrolled).
    o_heads = []
    for h in range(H):
        q = qkv16[:, h * Dh:(h + 1) * Dh].reshape(Nb, T, Dh)
        k = qkv16[:, D + h * Dh:D + (h + 1) * Dh].reshape(Nb, T, Dh)
        v = qkv16[:, 2 * D + h * Dh:2 * D + (h + 1) * Dh].reshape(Nb, T, Dh)

        s = jnp.einsum("bqd,bkd->bqk", q, k,
                       preferred_element_type=f32)                   # (Nb, T, T)
        s = s - jnp.max(s, axis=-1, keepdims=True)
        p = jnp.exp(s)
        p = p * pl.reciprocal(jnp.sum(p, axis=-1, keepdims=True), approx=True)
        oh = jnp.einsum("bqk,bkd->bqd", p.astype(mm), v,
                        preferred_element_type=f32)                  # (Nb, T, Dh)
        o_heads.append(oh.reshape(R, Dh))

    o = o_heads[0] if H == 1 else jnp.concatenate(o_heads, axis=-1)  # (R, D = H*Dh)

    # Single lane-dense output projection: (R, D) @ (D, D).
    attn = jnp.dot(o.astype(mm), wo_ref[0],
                   preferred_element_type=f32) + bo_ref[0]           # (R, D)

    # residual + LayerNorm1 (post-LN, PyTorch default norm_first=False)
    x = _layer_norm(x + attn, g1_ref[0], b1_ref[0])

    # ---- feed-forward: Linear -> ReLU -> Linear ----------------------------------
    h1 = jnp.dot(x.astype(mm), w1_ref[0],
                 preferred_element_type=f32) + bf1_ref[0]            # (R, nhid)
    h1 = jnp.maximum(h1, 0.0)
    ff = jnp.dot(h1.astype(mm), w2_ref[0],
                 preferred_element_type=f32) + bf2_ref[0]            # (R, D)

    # residual + LayerNorm2
    x = _layer_norm(x + ff, g2_ref[0], b2_ref[0])

    x_sc[...] = x

    @pl.when(layer == pl.num_programs(1) - 1)
    def _():
        o_ref[...] = x.reshape(Nb, T, D).astype(o_ref.dtype)


# ----------------------------- host-side weight packing ----------------------

def pack_params(params, nhead):
    """PyTorch-layout weights -> kernel layout: pre-transposed (K-major) lane-dense
    matmul operands, bf16 matmul weights, f32 biases/LN params, attention scale folded
    into the q columns of Wqkv / bqkv."""
    w_in = params["in_proj_weight"]                     # (L, 3D, D), rows [Wq; Wk; Wv]
    L, _, D = w_in.shape
    H = nhead
    Dh = D // H
    mm = jnp.bfloat16
    scale = 1.0 / math.sqrt(Dh)

    # qkv = x @ in_proj_weight.T  ->  Wqkv = in_proj_weight.T : (L, D, 3D)
    # Column order after transpose is [q (D cols, head-major) | k (D) | v (D)].
    wqkv = jnp.swapaxes(w_in, -1, -2)                   # (L, D, 3D) f32
    wqkv = wqkv.at[:, :, :D].multiply(scale)            # fold 1/sqrt(Dh) into Wq
    bqkv = params["in_proj_bias"]                       # (L, 3D)
    bqkv = bqkv.at[:, :D].multiply(scale)
    bqkv = bqkv.reshape(L, 1, 3 * D)

    # attn_out = o @ out_proj.weight.T
    wo = jnp.swapaxes(params["out_proj_weight"], -1, -2)   # (L, D, D)
    bo = params["out_proj_bias"].reshape(L, 1, D)

    w1 = jnp.swapaxes(params["linear1_weight"], -1, -2)    # (L, D, nhid)
    w2 = jnp.swapaxes(params["linear2_weight"], -1, -2)    # (L, nhid, D)
    nhid = w1.shape[-1]

    return dict(
        wqkv=wqkv.astype(mm), bqkv=bqkv.astype(jnp.float32),
        wo=wo.astype(mm), bo=bo.astype(jnp.float32),
        g1=params["norm1_weight"].reshape(L, 1, D),
        b1=params["norm1_bias"].reshape(L, 1, D),
        w1=w1.astype(mm), bf1=params["linear1_bias"].reshape(L, 1, nhid),
        w2=w2.astype(mm), bf2=params["linear2_bias"].reshape(L, 1, D),
        g2=params["norm2_weight"].reshape(L, 1, D),
        b2=params["norm2_bias"].reshape(L, 1, D),
    )


# ----------------------------- wrapper ---------------------------------------

def _pick_block_n(N, T):
    """Target R = block_n*T of a few hundred rows and >= 2 grid steps when possible."""
    target_rows = 512
    bn = max(1, min(N, max(1, target_rows // max(T, 1))))
    while N % bn != 0:
        bn -= 1
    if bn == N and N > 1:               # keep >= 2 batch tiles so both v7x TCs get work
        bn = N // 2
        while N % bn != 0:
            bn -= 1
    return bn


def transformer_forward(src, pe, params, *, nlayers, nhead, block_n=None):
    """src: (N, T, D) f32; pe: (T, D) f32; params: PyTorch-layout weight dict."""
    N, T, D = src.shape
    assert D % nhead == 0
    if block_n is None:
        block_n = _pick_block_n(N, T)
    assert N % block_n == 0, "batch must be divisible by the batch tile"
    grid_n = N // block_n

    kp = pack_params(params, nhead)
    nhid = kp["w1"].shape[-1]
    L = nlayers
    R = block_n * T

    kernel = functools.partial(_transformer_kernel, nhead=nhead)

    # Per-layer weight streaming: block index l along the leading layer axis.
    def per_layer(arr):
        shp = (1,) + arr.shape[1:]
        nd = arr.ndim
        return pl.BlockSpec(shp, lambda n, l, _nd=nd: (l,) + (0,) * (_nd - 1))

    weight_arrays = [kp["wqkv"], kp["bqkv"], kp["wo"], kp["bo"],
                     kp["g1"], kp["b1"],
                     kp["w1"], kp["bf1"], kp["w2"], kp["bf2"],
                     kp["g2"], kp["b2"]]

    in_specs = ([pl.BlockSpec((block_n, T, D), lambda n, l: (n, 0, 0)),   # src tile
                 pl.BlockSpec((T, D), lambda n, l: (0, 0))]               # pe (constant)
                + [per_layer(a) for a in weight_arrays])

    # ---- honest per-step VMEM footprint (one layer of weights, one batch tile) ----
    def nbytes(a):
        return int(a.size) * a.dtype.itemsize

    per_layer_w = sum(nbytes(a) for a in weight_arrays) // L
    x_blk = block_n * T * D * 4
    pe_b = T * D * 4
    out_blk = block_n * T * D * 4
    act = (R * D * 4                      # x scratch carry
           + R * 3 * D * (4 + 2)          # qkv f32 + bf16 copy
           + 2 * block_n * T * T * 4      # per-head scores / probs (f32)
           + R * D * (4 + 2)              # concatenated heads + bf16 cast
           + R * nhid * (4 + 2)           # FFN hidden
           + 4 * R * D * 4)               # residual / LN temporaries
    per_step = 2 * (x_blk + pe_b + out_blk) + 2 * per_layer_w + act

    try:
        cap = int(pltpu.get_tpu_info().vmem_capacity_bytes)
    except Exception:
        cap = 64 * 1024 * 1024            # conservative (v7x-sized) fallback
    headroom = max(8 << 20, cap // 8)     # leave Mosaic scratch headroom
    vmem_limit = max(16 << 20, min(cap - headroom, max(16 << 20, int(1.5 * per_step))))

    return pl.pallas_call(
        kernel,
        out_shape=jax.ShapeDtypeStruct((N, T, D), jnp.float32),
        grid=(grid_n, nlayers),
        in_specs=in_specs,
        out_specs=pl.BlockSpec((block_n, T, D), lambda n, l: (n, 0, 0)),
        scratch_shapes=[pltpu.VMEM((R, D), jnp.float32)],
        compiler_params=pltpu.CompilerParams(
            dimension_semantics=("parallel", "arbitrary"),
            vmem_limit_bytes=int(vmem_limit)),
    )(src, pe, *weight_arrays)


# ----------------------------- glue (plain JAX) -------------------------------

def make_positional_encoding(max_len, d_model):
    """Replicates PositionalEncoding.pe (squeezed to (max_len, d_model))."""
    position = jnp.arange(max_len, dtype=jnp.float32)[:, None]
    div_term = jnp.exp(jnp.arange(0, d_model, 2, dtype=jnp.float32)
                       * (-math.log(10000.0) / d_model))
    pe = jnp.zeros((max_len, d_model), dtype=jnp.float32)
    pe = pe.at[:, 0::2].set(jnp.sin(position * div_term))
    pe = pe.at[:, 1::2].set(jnp.cos(position * div_term))
    return pe


def init_params(key, nlayers, d_model, nhid):
    """Deterministic synthetic weights with PyTorch TransformerEncoderLayer shapes."""
    keys = jax.random.split(key, 8)
    L, D = nlayers, d_model

    def u(k, shape, scale=0.1):
        return jax.random.uniform(k, shape, jnp.float32, -scale, scale)

    return dict(
        in_proj_weight=u(keys[0], (L, 3 * D, D)),     # self_attn.in_proj_weight
        in_proj_bias=u(keys[1], (L, 3 * D)),          # self_attn.in_proj_bias
        out_proj_weight=u(keys[2], (L, D, D)),        # self_attn.out_proj.weight
        out_proj_bias=u(keys[3], (L, D)),             # self_attn.out_proj.bias
        norm1_weight=jnp.ones((L, D), jnp.float32),
        norm1_bias=jnp.zeros((L, D), jnp.float32),
        linear1_weight=u(keys[4], (L, nhid, D)),
        linear1_bias=u(keys[5], (L, nhid)),
        linear2_weight=u(keys[6], (L, D, nhid)),
        linear2_bias=u(keys[7], (L, D)),
        norm2_weight=jnp.ones((L, D), jnp.float32),
        norm2_bias=jnp.zeros((L, D), jnp.float32),
    )


def _ln_ref(x, g, b, eps=1e-5):
    mu = jnp.mean(x, axis=-1, keepdims=True)
    var = jnp.mean((x - mu) ** 2, axis=-1, keepdims=True)
    return (x - mu) * jax.lax.rsqrt(var + eps) * g + b


def reference_forward(src, pe, params, *, nlayers, nhead):
    """Pure-JAX f32 reference reproducing the PyTorch module (eval mode)."""
    N, T, D = src.shape
    H, Dh = nhead, D // nhead
    x = src.astype(jnp.float32) * math.sqrt(D) + pe[None]
    for l in range(nlayers):
        qkv = x @ params["in_proj_weight"][l].T + params["in_proj_bias"][l]
        q, k, v = jnp.split(qkv, 3, axis=-1)

        def heads(z):
            return z.reshape(N, T, H, Dh).transpose(0, 2, 1, 3)

        qh, kh, vh = heads(q), heads(k), heads(v)
        s = jnp.einsum("nhqd,nhkd->nhqk", qh, kh) / math.sqrt(Dh)
        p = jax.nn.softmax(s, axis=-1)
        o = jnp.einsum("nhqk,nhkd->nhqd", p, vh)
        attn = (o.transpose(0, 2, 1, 3).reshape(N, T, D)
                @ params["out_proj_weight"][l].T + params["out_proj_bias"][l])
        x = _ln_ref(x + attn, params["norm1_weight"][l], params["norm1_bias"][l])

        h1 = jnp.maximum(x @ params["linear1_weight"][l].T + params["linear1_bias"][l], 0.0)
        ff = h1 @ params["linear2_weight"][l].T + params["linear2_bias"][l]
        x = _ln_ref(x + ff, params["norm2_weight"][l], params["norm2_bias"][l])
    return x


# ----------------------------- main -------------------------------------------

if __name__ == "__main__":
    # Small shapes consistent with the module: (N, T, D), D divisible by nhead, T <= max_len=15.
    N, T, D = 4, 8, 8
    NHEAD, NHID, NLAYERS = 2, 32, 2

    key = jax.random.PRNGKey(0)
    k_x, k_p = jax.random.split(key)

    src = jax.random.normal(k_x, (N, T, D), dtype=jnp.float32)
    params = init_params(k_p, NLAYERS, D, NHID)
    pe = make_positional_encoding(15, D)[:T]          # (T, D)

    out = transformer_forward(src, pe, params, nlayers=NLAYERS, nhead=NHEAD)
    out = jax.block_until_ready(out)

    assert out.shape == (N, T, D) and out.dtype == jnp.float32
    assert bool(jnp.all(jnp.isfinite(out)))

    # Numerical check against the f32 pure-JAX reference (loose tol: bf16 matmuls
    # + approx reciprocal in the kernel).
    ref = reference_forward(src, pe, params, nlayers=NLAYERS, nhead=NHEAD)
    max_err = float(jnp.max(jnp.abs(out - ref)))
    assert max_err < 0.2, f"kernel/reference mismatch: max abs err = {max_err}"

    print("KERNEL_OK")
</pallas_src>

<mosaic_0001>
module attributes {stable_mosaic.version = 11 : i64} {
  func.func @_transformer_kernel(%arg0: i32, %arg1: i32, %arg2: memref<2x8x8xf32, #tpu.memory_space<vmem>>, %arg3: memref<8x8xf32, #tpu.memory_space<vmem>>, %arg4: memref<1x8x24xbf16, #tpu.memory_space<vmem>>, %arg5: memref<1x1x24xf32, #tpu.memory_space<vmem>>, %arg6: memref<1x8x8xbf16, #tpu.memory_space<vmem>>, %arg7: memref<1x1x8xf32, #tpu.memory_space<vmem>>, %arg8: memref<1x1x8xf32, #tpu.memory_space<vmem>>, %arg9: memref<1x1x8xf32, #tpu.memory_space<vmem>>, %arg10: memref<1x8x32xbf16, #tpu.memory_space<vmem>>, %arg11: memref<1x1x32xf32, #tpu.memory_space<vmem>>, %arg12: memref<1x32x8xbf16, #tpu.memory_space<vmem>>, %arg13: memref<1x1x8xf32, #tpu.memory_space<vmem>>, %arg14: memref<1x1x8xf32, #tpu.memory_space<vmem>>, %arg15: memref<1x1x8xf32, #tpu.memory_space<vmem>>, %arg16: memref<2x8x8xf32, #tpu.memory_space<vmem>>, %arg17: memref<16x8xf32, #tpu.memory_space<vmem>>) attributes {dimension_semantics = [#tpu.dimension_semantics<parallel>, #tpu.dimension_semantics<arbitrary>], iteration_bounds = array<i64: 2, 2>, scalar_prefetch = 0 : i64, scratch_operands = 1 : i64, tpu.core_type = #tpu.core_type<tc>, window_params = [{transform_indices = @transform_0, window_bounds = array<i64: 2, 8, 8>}, {pipeline_mode = #tpu.pipeline_mode<synchronous>, transform_indices = @transform_1, window_bounds = array<i64: 8, 8>}, {transform_indices = @transform_2, window_bounds = array<i64: 1, 8, 24>}, {transform_indices = @transform_3, window_bounds = array<i64: 1, 1, 24>}, {transform_indices = @transform_4, window_bounds = array<i64: 1, 8, 8>}, {transform_indices = @transform_5, window_bounds = array<i64: 1, 1, 8>}, {transform_indices = @transform_6, window_bounds = array<i64: 1, 1, 8>}, {transform_indices = @transform_7, window_bounds = array<i64: 1, 1, 8>}, {transform_indices = @transform_8, window_bounds = array<i64: 1, 8, 32>}, {transform_indices = @transform_9, window_bounds = array<i64: 1, 1, 32>}, {transform_indices = @transform_10, window_bounds = array<i64: 1, 32, 8>}, {transform_indices = @transform_11, window_bounds = array<i64: 1, 1, 8>}, {transform_indices = @transform_12, window_bounds = array<i64: 1, 1, 8>}, {transform_indices = @transform_13, window_bounds = array<i64: 1, 1, 8>}, {transform_indices = @transform_14, window_bounds = array<i64: 2, 8, 8>}]} {
    %c0_i32 = arith.constant 0 : i32
    %0 = arith.cmpi eq, %arg1, %c0_i32 : i32
    %1 = arith.extui %0 : i1 to i32
    %c0_i32_0 = arith.constant 0 : i32
    %2 = arith.cmpi ne, %1, %c0_i32_0 : i32
    scf.if %2 {
      %c0_63 = arith.constant 0 : index
      %c0_64 = arith.constant 0 : index
      %c0_65 = arith.constant 0 : index
      %134 = vector.load %arg2[%c0_63, %c0_64, %c0_65] : memref<2x8x8xf32, #tpu.memory_space<vmem>>, vector<2x8x8xf32>
      %cst_66 = arith.constant 2.82842708 : f32
      %135 = vector.broadcast %cst_66 : f32 to vector<2x8x8xf32>
      %136 = arith.mulf %134, %135 : vector<2x8x8xf32>
      %c0_67 = arith.constant 0 : index
      %c0_68 = arith.constant 0 : index
      %137 = vector.load %arg3[%c0_67, %c0_68] : memref<8x8xf32, #tpu.memory_space<vmem>>, vector<8x8xf32>
      %138 = vector.shape_cast %137 : vector<8x8xf32> to vector<1x8x8xf32>
      %139 = vector.broadcast %138 : vector<1x8x8xf32> to vector<2x8x8xf32>
      %140 = arith.addf %136, %139 : vector<2x8x8xf32>
      %141 = vector.shape_cast %140 : vector<2x8x8xf32> to vector<16x8xf32>
      %c0_69 = arith.constant 0 : index
      %c0_70 = arith.constant 0 : index
      %142 = vector.load %arg17[%c0_69, %c0_70] : memref<16x8xf32, #tpu.memory_space<vmem>>, vector<16x8xf32>
      tpu.vector_store %arg17[%c0_69, %c0_70], %141 {strides = array<i32>} : memref<16x8xf32, #tpu.memory_space<vmem>>, vector<16x8xf32>,
    } else {
    }
    %c0 = arith.constant 0 : index
    %c0_1 = arith.constant 0 : index
    %3 = vector.load %arg17[%c0, %c0_1] : memref<16x8xf32, #tpu.memory_space<vmem>>, vector<16x8xf32>
    %4 = arith.truncf %3 : vector<16x8xf32> to vector<16x8xbf16>
    %c0_2 = arith.constant 0 : index
    %c0_3 = arith.constant 0 : index
    %c0_4 = arith.constant 0 : index
    %5 = vector.load %arg4[%c0_2, %c0_3, %c0_4] : memref<1x8x24xbf16, #tpu.memory_space<vmem>>, vector<1x8x24xbf16>
    %6 = vector.shape_cast %5 : vector<1x8x24xbf16> to vector<8x24xbf16>
    %cst = arith.constant dense<0.000000e+00> : vector<16x24xf32>
    %7 = tpu.matmul %4, %6, %cst {dimension_numbers = #tpu.dot_dimension_numbers<[1], [0], [0], [1], [0, 0, 1, 1], [], []>} : vector<16x8xbf16>, vector<8x24xbf16>, vector<16x24xf32> -> vector<16x24xf32>
    %c0_5 = arith.constant 0 : index
    %c0_6 = arith.constant 0 : index
    %c0_7 = arith.constant 0 : index
    %8 = vector.load %arg5[%c0_5, %c0_6, %c0_7] : memref<1x1x24xf32, #tpu.memory_space<vmem>>, vector<1x1x24xf32>
    %9 = vector.shape_cast %8 : vector<1x1x24xf32> to vector<1x24xf32>
    %10 = vector.broadcast %9 : vector<1x24xf32> to vector<16x24xf32>
    %11 = arith.addf %7, %10 : vector<16x24xf32>
    %12 = arith.truncf %11 : vector<16x24xf32> to vector<16x24xbf16>
    %13 = vector.extract_strided_slice %12 {offsets = [0, 0], sizes = [16, 4], strides = [1, 1]} : vector<16x24xbf16> to vector<16x4xbf16>
    %14 = vector.shape_cast %13 : vector<16x4xbf16> to vector<2x8x4xbf16>
    %15 = vector.extract_strided_slice %12 {offsets = [0, 8], sizes = [16, 4], strides = [1, 1]} : vector<16x24xbf16> to vector<16x4xbf16>
    %16 = vector.shape_cast %15 : vector<16x4xbf16> to vector<2x8x4xbf16>
    %17 = vector.extract_strided_slice %12 {offsets = [0, 16], sizes = [16, 4], strides = [1, 1]} : vector<16x24xbf16> to vector<16x4xbf16>
    %18 = vector.shape_cast %17 : vector<16x4xbf16> to vector<2x8x4xbf16>
    "tpu.trace_start"() <{level = 10 : i32, message = "bqd,bkd->bqk"}> : () -> ()
    %cst_8 = arith.constant dense<0.000000e+00> : vector<2x8x8xf32>
    %19 = tpu.matmul %14, %16, %cst_8 {dimension_numbers = #tpu.dot_dimension_numbers<[2], [2], [1], [1], [0, 0, 0, 1, 1, 1], [0], [0]>} : vector<2x8x4xbf16>, vector<2x8x4xbf16>, vector<2x8x8xf32> -> vector<2x8x8xf32>
    "tpu.trace_stop"() : () -> ()
    %cst_9 = arith.constant dense<0xFF800000> : vector<2x8xf32>
    %20 = vector.multi_reduction <maximumf>, %19, %cst_9 [2] : vector<2x8x8xf32> to vector<2x8xf32>
    %21 = vector.shape_cast %20 : vector<2x8xf32> to vector<2x8x1xf32>
    %22 = vector.broadcast %21 : vector<2x8x1xf32> to vector<2x8x8xf32>
    %23 = arith.subf %19, %22 : vector<2x8x8xf32>
    %24 = math.exp %23 : vector<2x8x8xf32>
    %cst_10 = arith.constant dense<0.000000e+00> : vector<2x8xf32>
    %25 = vector.multi_reduction <add>, %24, %cst_10 [2] : vector<2x8x8xf32> to vector<2x8xf32>
    %26 = vector.shape_cast %25 : vector<2x8xf32> to vector<2x8x1xf32>
    %27 = tpu.reciprocal %26 {approx = true} : vector<2x8x1xf32> -> vector<2x8x1xf32>
    %28 = vector.broadcast %27 : vector<2x8x1xf32> to vector<2x8x8xf32>
    %29 = arith.mulf %24, %28 : vector<2x8x8xf32>
    %30 = arith.truncf %29 : vector<2x8x8xf32> to vector<2x8x8xbf16>
    "tpu.trace_start"() <{level = 10 : i32, message = "bqk,bkd->bqd"}> : () -> ()
    %cst_11 = arith.constant dense<0.000000e+00> : vector<2x8x4xf32>
    %31 = tpu.matmul %30, %18, %cst_11 {dimension_numbers = #tpu.dot_dimension_numbers<[2], [1], [1], [2], [0, 0, 0, 1, 1, 2], [0], [0]>} : vector<2x8x8xbf16>, vector<2x8x4xbf16>, vector<2x8x4xf32> -> vector<2x8x4xf32>
    "tpu.trace_stop"() : () -> ()
    %32 = vector.shape_cast %31 : vector<2x8x4xf32> to vector<16x4xf32>
    %33 = vector.extract_strided_slice %12 {offsets = [0, 4], sizes = [16, 4], strides = [1, 1]} : vector<16x24xbf16> to vector<16x4xbf16>
    %34 = vector.shape_cast %33 : vector<16x4xbf16> to vector<2x8x4xbf16>
    %35 = vector.extract_strided_slice %12 {offsets = [0, 12], sizes = [16, 4], strides = [1, 1]} : vector<16x24xbf16> to vector<16x4xbf16>
    %36 = vector.shape_cast %35 : vector<16x4xbf16> to vector<2x8x4xbf16>
    %37 = vector.extract_strided_slice %12 {offsets = [0, 20], sizes = [16, 4], strides = [1, 1]} : vector<16x24xbf16> to vector<16x4xbf16>
    %38 = vector.shape_cast %37 : vector<16x4xbf16> to vector<2x8x4xbf16>
    "tpu.trace_start"() <{level = 10 : i32, message = "bqd,bkd->bqk"}> : () -> ()
    %cst_12 = arith.constant dense<0.000000e+00> : vector<2x8x8xf32>
    %39 = tpu.matmul %34, %36, %cst_12 {dimension_numbers = #tpu.dot_dimension_numbers<[2], [2], [1], [1], [0, 0, 0, 1, 1, 1], [0], [0]>} : vector<2x8x4xbf16>, vector<2x8x4xbf16>, vector<2x8x8xf32> -> vector<2x8x8xf32>
    "tpu.trace_stop"() : () -> ()
    %cst_13 = arith.constant dense<0xFF800000> : vector<2x8xf32>
    %40 = vector.multi_reduction <maximumf>, %39, %cst_13 [2] : vector<2x8x8xf32> to vector<2x8xf32>
    %41 = vector.shape_cast %40 : vector<2x8xf32> to vector<2x8x1xf32>
    %42 = vector.broadcast %41 : vector<2x8x1xf32> to vector<2x8x8xf32>
    %43 = arith.subf %39, %42 : vector<2x8x8xf32>
    %44 = math.exp %43 : vector<2x8x8xf32>
    %cst_14 = arith.constant dense<0.000000e+00> : vector<2x8xf32>
    %45 = vector.multi_reduction <add>, %44, %cst_14 [2] : vector<2x8x8xf32> to vector<2x8xf32>
    %46 = vector.shape_cast %45 : vector<2x8xf32> to vector<2x8x1xf32>
    %47 = tpu.reciprocal %46 {approx = true} : vector<2x8x1xf32> -> vector<2x8x1xf32>
    %48 = vector.broadcast %47 : vector<2x8x1xf32> to vector<2x8x8xf32>
    %49 = arith.mulf %44, %48 : vector<2x8x8xf32>
    %50 = arith.truncf %49 : vector<2x8x8xf32> to vector<2x8x8xbf16>
    "tpu.trace_start"() <{level = 10 : i32, message = "bqk,bkd->bqd"}> : () -> ()
    %cst_15 = arith.constant dense<0.000000e+00> : vector<2x8x4xf32>
    %51 = tpu.matmul %50, %38, %cst_15 {dimension_numbers = #tpu.dot_dimension_numbers<[2], [1], [1], [2], [0, 0, 0, 1, 1, 2], [0], [0]>} : vector<2x8x8xbf16>, vector<2x8x4xbf16>, vector<2x8x4xf32> -> vector<2x8x4xf32>
    "tpu.trace_stop"() : () -> ()
    %52 = vector.shape_cast %51 : vector<2x8x4xf32> to vector<16x4xf32>
    %53 = tpu.concatenate %32, %52 in 1 : vector<16x4xf32>, vector<16x4xf32> -> vector<16x8xf32>
    %54 = arith.truncf %53 : vector<16x8xf32> to vector<16x8xbf16>
    %c0_16 = arith.constant 0 : index
    %c0_17 = arith.constant 0 : index
    %c0_18 = arith.constant 0 : index
    %55 = vector.load %arg6[%c0_16, %c0_17, %c0_18] : memref<1x8x8xbf16, #tpu.memory_space<vmem>>, vector<1x8x8xbf16>
    %56 = vector.shape_cast %55 : vector<1x8x8xbf16> to vector<8x8xbf16>
    %cst_19 = arith.constant dense<0.000000e+00> : vector<16x8xf32>
    %57 = tpu.matmul %54, %56, %cst_19 {dimension_numbers = #tpu.dot_dimension_numbers<[1], [0], [0], [1], [0, 0, 1, 1], [], []>} : vector<16x8xbf16>, vector<8x8xbf16>, vector<16x8xf32> -> vector<16x8xf32>
    %c0_20 = arith.constant 0 : index
    %c0_21 = arith.constant 0 : index
    %c0_22 = arith.constant 0 : index
    %58 = vector.load %arg7[%c0_20, %c0_21, %c0_22] : memref<1x1x8xf32, #tpu.memory_space<vmem>>, vector<1x1x8xf32>
    %59 = vector.shape_cast %58 : vector<1x1x8xf32> to vector<1x8xf32>
    %60 = vector.broadcast %59 : vector<1x8xf32> to vector<16x8xf32>
    %61 = arith.addf %57, %60 : vector<16x8xf32>
    %62 = arith.addf %3, %61 : vector<16x8xf32>
    %c0_23 = arith.constant 0 : index
    %c0_24 = arith.constant 0 : index
    %c0_25 = arith.constant 0 : index
    %63 = vector.load %arg8[%c0_23, %c0_24, %c0_25] : memref<1x1x8xf32, #tpu.memory_space<vmem>>, vector<1x1x8xf32>
    %64 = vector.shape_cast %63 : vector<1x1x8xf32> to vector<1x8xf32>
    %c0_26 = arith.constant 0 : index
    %c0_27 = arith.constant 0 : index
    %c0_28 = arith.constant 0 : index
    %65 = vector.load %arg9[%c0_26, %c0_27, %c0_28] : memref<1x1x8xf32, #tpu.memory_space<vmem>>, vector<1x1x8xf32>
    %66 = vector.shape_cast %65 : vector<1x1x8xf32> to vector<1x8xf32>
    %cst_29 = arith.constant dense<0.000000e+00> : vector<16xf32>
    %67 = vector.multi_reduction <add>, %62, %cst_29 [1] : vector<16x8xf32> to vector<16xf32>
    %68 = vector.shape_cast %67 : vector<16xf32> to vector<16x1xf32>
    %cst_30 = arith.constant 8.000000e+00 : f32
    %69 = vector.broadcast %cst_30 : f32 to vector<16x1xf32>
    %70 = arith.divf %68, %69 : vector<16x1xf32>
    %71 = vector.broadcast %70 : vector<16x1xf32> to vector<16x8xf32>
    %72 = arith.subf %62, %71 : vector<16x8xf32>
    %73 = arith.mulf %72, %72 : vector<16x8xf32>
    %cst_31 = arith.constant dense<0.000000e+00> : vector<16xf32>
    %74 = vector.multi_reduction <add>, %73, %cst_31 [1] : vector<16x8xf32> to vector<16xf32>
    %75 = vector.shape_cast %74 : vector<16xf32> to vector<16x1xf32>
    %cst_32 = arith.constant 8.000000e+00 : f32
    %76 = vector.broadcast %cst_32 : f32 to vector<16x1xf32>
    %77 = arith.divf %75, %76 : vector<16x1xf32>
    %cst_33 = arith.constant 9.99999974E-6 : f32
    %78 = vector.broadcast %cst_33 : f32 to vector<16x1xf32>
    %79 = arith.addf %77, %78 : vector<16x1xf32>
    %80 = math.rsqrt %79 : vector<16x1xf32>
    %81 = vector.broadcast %80 : vector<16x1xf32> to vector<16x8xf32>
    %82 = arith.mulf %72, %81 : vector<16x8xf32>
    %83 = vector.broadcast %64 : vector<1x8xf32> to vector<16x8xf32>
    %84 = arith.mulf %82, %83 : vector<16x8xf32>
    %85 = vector.broadcast %66 : vector<1x8xf32> to vector<16x8xf32>
    %86 = arith.addf %84, %85 : vector<16x8xf32>
    %87 = arith.truncf %86 : vector<16x8xf32> to vector<16x8xbf16>
    %c0_34 = arith.constant 0 : index
    %c0_35 = arith.constant 0 : index
    %c0_36 = arith.constant 0 : index
    %88 = vector.load %arg10[%c0_34, %c0_35, %c0_36] : memref<1x8x32xbf16, #tpu.memory_space<vmem>>, vector<1x8x32xbf16>
    %89 = vector.shape_cast %88 : vector<1x8x32xbf16> to vector<8x32xbf16>
    %cst_37 = arith.constant dense<0.000000e+00> : vector<16x32xf32>
    %90 = tpu.matmul %87, %89, %cst_37 {dimension_numbers = #tpu.dot_dimension_numbers<[1], [0], [0], [1], [0, 0, 1, 1], [], []>} : vector<16x8xbf16>, vector<8x32xbf16>, vector<16x32xf32> -> vector<16x32xf32>
    %c0_38 = arith.constant 0 : index
    %c0_39 = arith.constant 0 : index
    %c0_40 = arith.constant 0 : index
    %91 = vector.load %arg11[%c0_38, %c0_39, %c0_40] : memref<1x1x32xf32, #tpu.memory_space<vmem>>, vector<1x1x32xf32>
    %92 = vector.shape_cast %91 : vector<1x1x32xf32> to vector<1x32xf32>
    %93 = vector.broadcast %92 : vector<1x32xf32> to vector<16x32xf32>
    %94 = arith.addf %90, %93 : vector<16x32xf32>
    %cst_41 = arith.constant 0.000000e+00 : f32
    %95 = vector.broadcast %cst_41 : f32 to vector<16x32xf32>
    %96 = arith.maximumf %94, %95 : vector<16x32xf32>
    %97 = arith.truncf %96 : vector<16x32xf32> to vector<16x32xbf16>
    %c0_42 = arith.constant 0 : index
    %c0_43 = arith.constant 0 : index
    %c0_44 = arith.constant 0 : index
    %98 = vector.load %arg12[%c0_42, %c0_43, %c0_44] : memref<1x32x8xbf16, #tpu.memory_space<vmem>>, vector<1x32x8xbf16>
    %99 = vector.shape_cast %98 : vector<1x32x8xbf16> to vector<32x8xbf16>
    %cst_45 = arith.constant dense<0.000000e+00> : vector<16x8xf32>
    %100 = tpu.matmul %97, %99, %cst_45 {dimension_numbers = #tpu.dot_dimension_numbers<[1], [0], [0], [1], [0, 0, 1, 1], [], []>} : vector<16x32xbf16>, vector<32x8xbf16>, vector<16x8xf32> -> vector<16x8xf32>
    %c0_46 = arith.constant 0 : index
    %c0_47 = arith.constant 0 : index
    %c0_48 = arith.constant 0 : index
    %101 = vector.load %arg13[%c0_46, %c0_47, %c0_48] : memref<1x1x8xf32, #tpu.memory_space<vmem>>, vector<1x1x8xf32>
    %102 = vector.shape_cast %101 : vector<1x1x8xf32> to vector<1x8xf32>
    %103 = vector.broadcast %102 : vector<1x8xf32> to vector<16x8xf32>
    %104 = arith.addf %100, %103 : vector<16x8xf32>
    %105 = arith.addf %86, %104 : vector<16x8xf32>
    %c0_49 = arith.constant 0 : index
    %c0_50 = arith.constant 0 : index
    %c0_51 = arith.constant 0 : index
    %106 = vector.load %arg14[%c0_49, %c0_50, %c0_51] : memref<1x1x8xf32, #tpu.memory_space<vmem>>, vector<1x1x8xf32>
    %107 = vector.shape_cast %106 : vector<1x1x8xf32> to vector<1x8xf32>
    %c0_52 = arith.constant 0 : index
    %c0_53 = arith.constant 0 : index
    %c0_54 = arith.constant 0 : index
    %108 = vector.load %arg15[%c0_52, %c0_53, %c0_54] : memref<1x1x8xf32, #tpu.memory_space<vmem>>, vector<1x1x8xf32>
    %109 = vector.shape_cast %108 : vector<1x1x8xf32> to vector<1x8xf32>
    %cst_55 = arith.constant dense<0.000000e+00> : vector<16xf32>
    %110 = vector.multi_reduction <add>, %105, %cst_55 [1] : vector<16x8xf32> to vector<16xf32>
    %111 = vector.shape_cast %110 : vector<16xf32> to vector<16x1xf32>
    %cst_56 = arith.constant 8.000000e+00 : f32
    %112 = vector.broadcast %cst_56 : f32 to vector<16x1xf32>
    %113 = arith.divf %111, %112 : vector<16x1xf32>
    %114 = vector.broadcast %113 : vector<16x1xf32> to vector<16x8xf32>
    %115 = arith.subf %105, %114 : vector<16x8xf32>
    %116 = arith.mulf %115, %115 : vector<16x8xf32>
    %cst_57 = arith.constant dense<0.000000e+00> : vector<16xf32>
    %117 = vector.multi_reduction <add>, %116, %cst_57 [1] : vector<16x8xf32> to vector<16xf32>
    %118 = vector.shape_cast %117 : vector<16xf32> to vector<16x1xf32>
    %cst_58 = arith.constant 8.000000e+00 : f32
    %119 = vector.broadcast %cst_58 : f32 to vector<16x1xf32>
    %120 = arith.divf %118, %119 : vector<16x1xf32>
    %cst_59 = arith.constant 9.99999974E-6 : f32
    %121 = vector.broadcast %cst_59 : f32 to vector<16x1xf32>
    %122 = arith.addf %120, %121 : vector<16x1xf32>
    %123 = math.rsqrt %122 : vector<16x1xf32>
    %124 = vector.broadcast %123 : vector<16x1xf32> to vector<16x8xf32>
    %125 = arith.mulf %115, %124 : vector<16x8xf32>
    %126 = vector.broadcast %107 : vector<1x8xf32> to vector<16x8xf32>
    %127 = arith.mulf %125, %126 : vector<16x8xf32>
    %128 = vector.broadcast %109 : vector<1x8xf32> to vector<16x8xf32>
    %129 = arith.addf %127, %128 : vector<16x8xf32>
    %c0_60 = arith.constant 0 : index
    %c0_61 = arith.constant 0 : index
    %130 = vector.load %arg17[%c0_60, %c0_61] : memref<16x8xf32, #tpu.memory_space<vmem>>, vector<16x8xf32>
    tpu.vector_store %arg17[%c0_60, %c0_61], %129 {strides = array<i32>} : memref<16x8xf32, #tpu.memory_space<vmem>>, vector<16x8xf32>,
    %c1_i32 = arith.constant 1 : i32
    %131 = arith.cmpi eq, %arg1, %c1_i32 : i32
    %132 = arith.extui %131 : i1 to i32
    %c0_i32_62 = arith.constant 0 : i32
    %133 = arith.cmpi ne, %132, %c0_i32_62 : i32
    scf.if %133 {
      %134 = vector.shape_cast %129 : vector<16x8xf32> to vector<2x8x8xf32>
      %c0_63 = arith.constant 0 : index
      %c0_64 = arith.constant 0 : index
      %c0_65 = arith.constant 0 : index
      %135 = vector.load %arg16[%c0_63, %c0_64, %c0_65] : memref<2x8x8xf32, #tpu.memory_space<vmem>>, vector<2x8x8xf32>
      tpu.vector_store %arg16[%c0_63, %c0_64, %c0_65], %134 {strides = array<i32>} : memref<2x8x8xf32, #tpu.memory_space<vmem>>, vector<2x8x8xf32>,
    } else {
    }
    return
  }
  func.func @transform_0(%arg0: i32, %arg1: i32) -> (i32, i32, i32) {
    %c0_i32 = arith.constant 0 : i32
    %c0_i32_0 = arith.constant 0 : i32
    %c0_i32_1 = arith.constant 0 : i32
    return %arg0, %c0_i32, %c0_i32_0 : i32, i32, i32
  }
  func.func @transform_1(%arg0: i32, %arg1: i32) -> (i32, i32) {
    %c0_i32 = arith.constant 0 : i32
    %c0_i32_0 = arith.constant 0 : i32
    %c0_i32_1 = arith.constant 0 : i32
    return %c0_i32, %c0_i32_0 : i32, i32
  }
  func.func @transform_2(%arg0: i32, %arg1: i32) -> (i32, i32, i32) {
    %c0_i32 = arith.constant 0 : i32
    %c0_i32_0 = arith.constant 0 : i32
    %c0_i32_1 = arith.constant 0 : i32
    return %arg1, %c0_i32, %c0_i32_0 : i32, i32, i32
  }
  func.func @transform_3(%arg0: i32, %arg1: i32) -> (i32, i32, i32) {
    %c0_i32 = arith.constant 0 : i32
    %c0_i32_0 = arith.constant 0 : i32
    %c0_i32_1 = arith.constant 0 : i32
    return %arg1, %c0_i32, %c0_i32_0 : i32, i32, i32
  }
  func.func @transform_4(%arg0: i32, %arg1: i32) -> (i32, i32, i32) {
    %c0_i32 = arith.constant 0 : i32
    %c0_i32_0 = arith.constant 0 : i32
    %c0_i32_1 = arith.constant 0 : i32
    return %arg1, %c0_i32, %c0_i32_0 : i32, i32, i32
  }
  func.func @transform_5(%arg0: i32, %arg1: i32) -> (i32, i32, i32) {
    %c0_i32 = arith.constant 0 : i32
    %c0_i32_0 = arith.constant 0 : i32
    %c0_i32_1 = arith.constant 0 : i32
    return %arg1, %c0_i32, %c0_i32_0 : i32, i32, i32
  }
  func.func @transform_6(%arg0: i32, %arg1: i32) -> (i32, i32, i32) {
    %c0_i32 = arith.constant 0 : i32
    %c0_i32_0 = arith.constant 0 : i32
    %c0_i32_1 = arith.constant 0 : i32
    return %arg1, %c0_i32, %c0_i32_0 : i32, i32, i32
  }
  func.func @transform_7(%arg0: i32, %arg1: i32) -> (i32, i32, i32) {
    %c0_i32 = arith.constant 0 : i32
    %c0_i32_0 = arith.constant 0 : i32
    %c0_i32_1 = arith.constant 0 : i32
    return %arg1, %c0_i32, %c0_i32_0 : i32, i32, i32
  }
  func.func @transform_8(%arg0: i32, %arg1: i32) -> (i32, i32, i32) {
    %c0_i32 = arith.constant 0 : i32
    %c0_i32_0 = arith.constant 0 : i32
    %c0_i32_1 = arith.constant 0 : i32
    return %arg1, %c0_i32, %c0_i32_0 : i32, i32, i32
  }
  func.func @transform_9(%arg0: i32, %arg1: i32) -> (i32, i32, i32) {
    %c0_i32 = arith.constant 0 : i32
    %c0_i32_0 = arith.constant 0 : i32
    %c0_i32_1 = arith.constant 0 : i32
    return %arg1, %c0_i32, %c0_i32_0 : i32, i32, i32
  }
  func.func @transform_10(%arg0: i32, %arg1: i32) -> (i32, i32, i32) {
    %c0_i32 = arith.constant 0 : i32
    %c0_i32_0 = arith.constant 0 : i32
    %c0_i32_1 = arith.constant 0 : i32
    return %arg1, %c0_i32, %c0_i32_0 : i32, i32, i32
  }
  func.func @transform_11(%arg0: i32, %arg1: i32) -> (i32, i32, i32) {
    %c0_i32 = arith.constant 0 : i32
    %c0_i32_0 = arith.constant 0 : i32
    %c0_i32_1 = arith.constant 0 : i32
    return %arg1, %c0_i32, %c0_i32_0 : i32, i32, i32
  }
  func.func @transform_12(%arg0: i32, %arg1: i32) -> (i32, i32, i32) {
    %c0_i32 = arith.constant 0 : i32
    %c0_i32_0 = arith.constant 0 : i32
    %c0_i32_1 = arith.constant 0 : i32
    return %arg1, %c0_i32, %c0_i32_0 : i32, i32, i32
  }
  func.func @transform_13(%arg0: i32, %arg1: i32) -> (i32, i32, i32) {
    %c0_i32 = arith.constant 0 : i32
    %c0_i32_0 = arith.constant 0 : i32
    %c0_i32_1 = arith.constant 0 : i32
    return %arg1, %c0_i32, %c0_i32_0 : i32, i32, i32
  }
  func.func @transform_14(%arg0: i32, %arg1: i32) -> (i32, i32, i32) {
    %c0_i32 = arith.constant 0 : i32
    %c0_i32_0 = arith.constant 0 : i32
    %c0_i32_1 = arith.constant 0 : i32
    return %arg0, %c0_i32, %c0_i32_0 : i32, i32, i32
  }
}

</mosaic_0001>

<llo_original>
// kernel: tpu_custom_call.1
$region0: #{tpu_custom_call.1}
  #allocation0 [shape = 'u32[]', space=smem, size = 0x4, offset = 0x4, fixed_abs, tag = 'smem constant byte address 0x4 - core index']
  #allocation1 [shape = 'u32[72,128]{1,0:T(1,128)}', space=vmem, size = 0x9000, scoped, tag = 'internal scratch']
  #allocation2 [shape = 'f32[16,8]{1,0:T(8,128)}', space=vmem, size = 0x2000, scoped, tag = 'scratch operand']
  %s0 = inlined_call_operand.vmem [shape: f32[4,8,8], index: 0, kind: input, shape index: {}]
  %s1 = inlined_call_operand.vmem [shape: f32[8,8], index: 1, kind: input, shape index: {}]
  %s2 = inlined_call_operand.hbm [shape: bf16[2,8,24], index: 2, kind: input, shape index: {}]
  %s3 = inlined_call_operand.hbm [shape: f32[2,1,24], index: 3, kind: input, shape index: {}]
  %s4 = inlined_call_operand.hbm [shape: bf16[2,8,8], index: 4, kind: input, shape index: {}]
  %s5 = inlined_call_operand.hbm [shape: f32[2,1,8], index: 5, kind: input, shape index: {}]
  %s6 = inlined_call_operand.hbm [shape: f32[2,1,8], index: 6, kind: input, shape index: {}]
  %s7 = inlined_call_operand.hbm [shape: f32[2,1,8], index: 7, kind: input, shape index: {}]
  %s8 = inlined_call_operand.hbm [shape: bf16[2,8,32], index: 8, kind: input, shape index: {}]
  %s9 = inlined_call_operand.hbm [shape: f32[2,1,32], index: 9, kind: input, shape index: {}]
  %s10 = inlined_call_operand.vmem [shape: bf16[2,32,8], index: 10, kind: input, shape index: {}]
  %s11 = inlined_call_operand.vmem [shape: f32[2,1,8], index: 11, kind: input, shape index: {}]
  %s12 = inlined_call_operand.hbm [shape: f32[2,1,8], index: 12, kind: input, shape index: {}]
  %s13 = inlined_call_operand.vmem [shape: f32[2,1,8], index: 13, kind: input, shape index: {}]
  %s14 = inlined_call_operand.hbm [shape: f32[4,8,8], index: 14, kind: output, shape index: {}]
  %s15 = sld [smem:[#allocation0]]
  $region133: #{tpu_custom_call.1} parent=0
    _
  %s17 = ssub.s32 1, %s15
  %s18 = scalar_select 0, %s17, %s15
  $region1: #{tpu_custom_call.1} parent=0
    #allocation3 [shape = 'u8[4096]{0}', space=vmem, size = 0x1000, scoped, tag = 'input window, operand 2']
    #allocation4 [shape = 's32[2]{0}', space=sflag, size = 0x8, scoped, tag = 'scoped memory for tpu_custom_call.1']
    #allocation5 [shape = 's32[2]{0}', space=sflag, size = 0x8, scoped, tag = 'scoped memory for tpu_custom_call.1']
    #allocation6 [shape = 'u8[1024]{0}', space=vmem, size = 0x400, scoped, tag = 'input window, operand 3']
    #allocation7 [shape = 's32[2]{0}', space=sflag, size = 0x8, scoped, tag = 'scoped memory for tpu_custom_call.1']
    #allocation8 [shape = 'u8[4096]{0}', space=vmem, size = 0x1000, scoped, tag = 'input window, operand 4']
    #allocation9 [shape = 'u8[1024]{0}', space=vmem, size = 0x400, scoped, tag = 'input window, operand 5']
    #allocation10 [shape = 's32[2]{0}', space=sflag, size = 0x8, scoped, tag = 'scoped memory for tpu_custom_call.1']
    #allocation11 [shape = 'u8[1024]{0}', space=vmem, size = 0x400, scoped, tag = 'input window, operand 6']
    #allocation12 [shape = 'u8[1024]{0}', space=vmem, size = 0x400, scoped, tag = 'input window, operand 7']
    #allocation13 [shape = 's32[2]{0}', space=sflag, size = 0x8, scoped, tag = 'scoped memory for tpu_custom_call.1']
    #allocation14 [shape = 'u8[4096]{0}', space=vmem, size = 0x1000, scoped, tag = 'input window, operand 8']
    #allocation15 [shape = 'u8[1024]{0}', space=vmem, size = 0x400, scoped, tag = 'input window, operand 9']
    #allocation16 [shape = 's32[2]{0}', space=sflag, size = 0x8, scoped, tag = 'scoped memory for tpu_custom_call.1']
    #allocation17 [shape = 'u8[1024]{0}', space=vmem, size = 0x400, scoped, tag = 'input window, operand 12']
    #allocation18 [shape = 'u8[16384]{0}', space=vmem, size = 0x4000, scoped, tag = 'output window, operand 0']
    %19 = vsyncpa [#allocation4], 0
    %s20 = scalar_lea.sflag [#allocation4], 1
    %21 = vsyncpa %s20, 0
    %22 = vsyncpa [#allocation7], 0
    %s23 = scalar_lea.sflag [#allocation7], 1
    %24 = vsyncpa %s23, 0
    %25 = vsyncpa [#allocation10], 0
    %s26 = scalar_lea.sflag [#allocation10], 1
    %27 = vsyncpa %s26, 0
    %28 = vsyncpa [#allocation13], 0
    %s29 = scalar_lea.sflag [#allocation13], 1
    %30 = vsyncpa %s29, 0
    %31 = vsyncpa [#allocation16], 0
    %s32 = scalar_lea.sflag [#allocation16], 1
    %33 = vsyncpa %s32, 0
    %34 = vsyncpa [#allocation5], 0
    %s35 = scalar_lea.sflag [#allocation5], 1
    %36 = vsyncpa %s35, 0
    loop: start=0, step=1, limit=6
    $region2: #{tpu_custom_call.1} parent=1 // loop_pre_header
      _
    $region3: #{tpu_custom_call.1} parent=1 // loop_header
      %s38 = sphi 0, %s42
      %p39 = scmp.ge.s32.totalorder %s38, 6
      %s45 = sphi 0, %s57
      %s46 = sphi 0, %s53
      %s47 = sphi 0, %s45
      %s48 = sphi 0, %s46
      %s49 = sphi 0, %s47
      %s50 = sphi 0, %s48
      %s60 = sphi 0, %s62
      %s63 = sphi 0, %s60
      %s64 = sphi 0, %s63
      %s80 = sphi 0, %s64
      %s84 = sphi 0, %s84
      %s86 = sphi 0, %s84
      %s87 = sphi 0, %s86
      %s101 = sphi 0, %s87
      %s107 = sphi 0, %s109
      %s110 = sphi 0, %s107
      %s111 = sphi 0, %s110
      %s127 = sphi 0, %s111
      %s133 = sphi 0, %s135
      %s136 = sphi 0, %s133
      %s137 = sphi 0, %s136
      %s153 = sphi 0, %s137
      %s159 = sphi 0, %s161
      %s162 = sphi 0, %s159
      %s163 = sphi 0, %s162
      %s179 = sphi 0, %s163
      %s185 = sphi 0, %s187
      %s188 = sphi 0, %s185
      %s189 = sphi 0, %s188
      %s205 = sphi 0, %s189
      %s211 = sphi 0, %s213
      %s214 = sphi 0, %s211
      %s215 = sphi 0, %s214
      %s231 = sphi 0, %s215
      %s237 = sphi 0, %s239
      %s240 = sphi 0, %s237
      %s241 = sphi 0, %s240
      %s257 = sphi 0, %s241
      %s263 = sphi 0, %s265
      %s266 = sphi 0, %s263
      %s267 = sphi 0, %s266
      %s283 = sphi 0, %s267
      %s289 = sphi 0, %s291
      %s292 = sphi 0, %s289
      %s293 = sphi 0, %s292
      %s309 = sphi 0, %s293
      %s315 = sphi 0, %s317
      %s318 = sphi 0, %s315
      %s319 = sphi 0, %s318
      %s335 = sphi 0, %s319
      %s341 = sphi 0, %s343
      %s344 = sphi 0, %s341
      %s345 = sphi 0, %s344
      %s361 = sphi 0, %s345
      %s367 = sphi 0, %s369
      %s370 = sphi 0, %s367
      %s371 = sphi 0, %s370
      %s387 = sphi 0, %s371
      %s393 = sphi 0, %s395
      %s396 = sphi 0, %s393
      %s397 = sphi 0, %s396
      %s413 = sphi 0, %s397
      %s419 = sphi 0, %s421
      %s422 = sphi 0, %s419
      %s423 = sphi 0, %s422
      %s439 = sphi 0, %s423
    $region4: #{tpu_custom_call.1} parent=1 // loop_header_branch
      %41 = sbr.rel (%p39) target = $region8
    $region5: #{tpu_custom_call.1} parent=1 // loop_body
      %s43 = ssub.s32 %s38, 1
      %s44 = ssub.s32 %s38, 2
      %s51 = sadd.s32 1, %s46
      %p52 = scmp.ge.s32.totalorder %s51, 2
      %s53 = scalar_select %p52, 0, %s51
      %s54 = sadd.s32 1, %s45
      %s55 = scalar_select %p52, %s54, %s45
      %p56 = scmp.ge.s32.totalorder %s55, 2
      %s57 = scalar_select %p56, 0, %s55
      %s58 = ssub.s32 %s45, %s57
      %p59 = scmp.eq.s32.totalorder %s58, 0
      %s61 = sadd.s32 %s60, 1
      %s62 = scalar_select %p59, %s60, %s61
      %p65 = pneg %p59
      %p66 = scmp.eq.s32.totalorder %s38, 3
      %p67 = por %p65, %p66
      %p68 = scmp.ne.s32.totalorder %s60, %s63
      %p69 = scmp.eq.s32.totalorder %s38, 0
      %p70 = por %p68, %p69
      %p71 = scmp.ne.s32.totalorder %s60, %s63
      %p72 = scmp.eq.s32.totalorder %s43, 3
      %p73 = por %p71, %p72
      %p74 = scmp.ne.s32.totalorder %s63, %s64
      %p75 = scmp.eq.s32.totalorder %s43, 0
      %p76 = por %p74, %p75
      %p77 = scmp.ne.s32.totalorder %s63, %s64
      %p78 = scmp.eq.s32.totalorder %s44, 3
      %p79 = por %p77, %p78
      %p81 = scmp.ne.s32.totalorder %s64, %s80
      %p82 = scmp.eq.s32.totalorder %s44, 0
      %p83 = por %p81, %p82
      %s85 = sadd.s32 %s84, 1
      %p88 = scmp.eq.s32.totalorder %s38, 3
      %p89 = scmp.ne.s32.totalorder %s84, %s86
      %p90 = scmp.eq.s32.totalorder %s38, 0
      %p91 = por %p89, %p90
      %p92 = scmp.ne.s32.totalorder %s84, %s86
      %p93 = scmp.eq.s32.totalorder %s43, 3
      %p94 = por %p92, %p93
      %p95 = scmp.ne.s32.totalorder %s86, %s87
      %p96 = scmp.eq.s32.totalorder %s43, 0
      %p97 = por %p95, %p96
      %p98 = scmp.ne.s32.totalorder %s86, %s87
      %p99 = scmp.eq.s32.totalorder %s44, 3
      %p100 = por %p98, %p99
      %p102 = scmp.ne.s32.totalorder %s87, %s101
      %p103 = scmp.eq.s32.totalorder %s44, 0
      %p104 = por %p102, %p103
      %s105 = ssub.s32 %s46, %s53
      %p106 = scmp.eq.s32.totalorder %s105, 0
      %s108 = sadd.s32 %s107, 1
      %s109 = scalar_select %p106, %s107, %s108
      %p112 = pneg %p106
      %p113 = scmp.eq.s32.totalorder %s38, 3
      %p114 = por %p112, %p113
      %p115 = scmp.ne.s32.totalorder %s107, %s110
      %p116 = scmp.eq.s32.totalorder %s38, 0
      %p117 = por %p115, %p116
      %p118 = scmp.ne.s32.totalorder %s107, %s110
      %p119 = scmp.eq.s32.totalorder %s43, 3
      %p120 = por %p118, %p119
      %p121 = scmp.ne.s32.totalorder %s110, %s111
      %p122 = scmp.eq.s32.totalorder %s43, 0
      %p123 = por %p121, %p122
      %p124 = scmp.ne.s32.totalorder %s110, %s111
      %p125 = scmp.eq.s32.totalorder %s44, 3
      %p126 = por %p124, %p125
      %p128 = scmp.ne.s32.totalorder %s111, %s127
      %p129 = scmp.eq.s32.totalorder %s44, 0
      %p130 = por %p128, %p129
      %s131 = ssub.s32 %s46, %s53
      %p132 = scmp.eq.s32.totalorder %s131, 0
      %s134 = sadd.s32 %s133, 1
      %s135 = scalar_select %p132, %s133, %s134
      %p138 = pneg %p132
      %p139 = scmp.eq.s32.totalorder %s38, 3
      %p140 = por %p138, %p139
      %p141 = scmp.ne.s32.totalorder %s133, %s136
      %p142 = scmp.eq.s32.totalorder %s38, 0
      %p143 = por %p141, %p142
      %p144 = scmp.ne.s32.totalorder %s133, %s136
      %p145 = scmp.eq.s32.totalorder %s43, 3
      %p146 = por %p144, %p145
      %p147 = scmp.ne.s32.totalorder %s136, %s137
      %p148 = scmp.eq.s32.totalorder %s43, 0
      %p149 = por %p147, %p148
      %p150 = scmp.ne.s32.totalorder %s136, %s137
      %p151 = scmp.eq.s32.totalorder %s44, 3
      %p152 = por %p150, %p151
      %p154 = scmp.ne.s32.totalorder %s137, %s153
      %p155 = scmp.eq.s32.totalorder %s44, 0
      %p156 = por %p154, %p155
      %s157 = ssub.s32 %s46, %s53
      %p158 = scmp.eq.s32.totalorder %s157, 0
      %s160 = sadd.s32 %s159, 1
      %s161 = scalar_select %p158, %s159, %s160
      %p164 = pneg %p158
      %p165 = scmp.eq.s32.totalorder %s38, 3
      %p166 = por %p164, %p165
      %p167 = scmp.ne.s32.totalorder %s159, %s162
      %p168 = scmp.eq.s32.totalorder %s38, 0
      %p169 = por %p167, %p168
      %p170 = scmp.ne.s32.totalorder %s159, %s162
      %p171 = scmp.eq.s32.totalorder %s43, 3
      %p172 = por %p170, %p171
      %p173 = scmp.ne.s32.totalorder %s162, %s163
      %p174 = scmp.eq.s32.totalorder %s43, 0
      %p175 = por %p173, %p174
      %p176 = scmp.ne.s32.totalorder %s162, %s163
      %p177 = scmp.eq.s32.totalorder %s44, 3
      %p178 = por %p176, %p177
      %p180 = scmp.ne.s32.totalorder %s163, %s179
      %p181 = scmp.eq.s32.totalorder %s44, 0
      %p182 = por %p180, %p181
      %s183 = ssub.s32 %s46, %s53
      %p184 = scmp.eq.s32.totalorder %s183, 0
      %s186 = sadd.s32 %s185, 1
      %s187 = scalar_select %p184, %s185, %s186
      %p190 = pneg %p184
      %p191 = scmp.eq.s32.totalorder %s38, 3
      %p192 = por %p190, %p191
      %p193 = scmp.ne.s32.totalorder %s185, %s188
      %p194 = scmp.eq.s32.totalorder %s38, 0
      %p195 = por %p193, %p194
      %p196 = scmp.ne.s32.totalorder %s185, %s188
      %p197 = scmp.eq.s32.totalorder %s43, 3
      %p198 = por %p196, %p197
      %p199 = scmp.ne.s32.totalorder %s188, %s189
      %p200 = scmp.eq.s32.totalorder %s43, 0
      %p201 = por %p199, %p200
      %p202 = scmp.ne.s32.totalorder %s188, %s189
      %p203 = scmp.eq.s32.totalorder %s44, 3
      %p204 = por %p202, %p203
      %p206 = scmp.ne.s32.totalorder %s189, %s205
      %p207 = scmp.eq.s32.totalorder %s44, 0
      %p208 = por %p206, %p207
      %s209 = ssub.s32 %s46, %s53
      %p210 = scmp.eq.s32.totalorder %s209, 0
      %s212 = sadd.s32 %s211, 1
      %s213 = scalar_select %p210, %s211, %s212
      %p216 = pneg %p210
      %p217 = scmp.eq.s32.totalorder %s38, 3
      %p218 = por %p216, %p217
      %p219 = scmp.ne.s32.totalorder %s211, %s214
      %p220 = scmp.eq.s32.totalorder %s38, 0
      %p221 = por %p219, %p220
      %p222 = scmp.ne.s32.totalorder %s211, %s214
      %p223 = scmp.eq.s32.totalorder %s43, 3
      %p224 = por %p222, %p223
      %p225 = scmp.ne.s32.totalorder %s214, %s215
      %p226 = scmp.eq.s32.totalorder %s43, 0
      %p227 = por %p225, %p226
      %p228 = scmp.ne.s32.totalorder %s214, %s215
      %p229 = scmp.eq.s32.totalorder %s44, 3
      %p230 = por %p228, %p229
      %p232 = scmp.ne.s32.totalorder %s215, %s231
      %p233 = scmp.eq.s32.totalorder %s44, 0
      %p234 = por %p232, %p233
      %s235 = ssub.s32 %s46, %s53
      %p236 = scmp.eq.s32.totalorder %s235, 0
      %s238 = sadd.s32 %s237, 1
      %s239 = scalar_select %p236, %s237, %s238
      %p242 = pneg %p236
      %p243 = scmp.eq.s32.totalorder %s38, 3
      %p244 = por %p242, %p243
      %p245 = scmp.ne.s32.totalorder %s237, %s240
      %p246 = scmp.eq.s32.totalorder %s38, 0
      %p247 = por %p245, %p246
      %p248 = scmp.ne.s32.totalorder %s237, %s240
      %p249 = scmp.eq.s32.totalorder %s43, 3
      %p250 = por %p248, %p249
      %p251 = scmp.ne.s32.totalorder %s240, %s241
      %p252 = scmp.eq.s32.totalorder %s43, 0
      %p253 = por %p251, %p252
      %p254 = scmp.ne.s32.totalorder %s240, %s241
      %p255 = scmp.eq.s32.totalorder %s44, 3
      %p256 = por %p254, %p255
      %p258 = scmp.ne.s32.totalorder %s241, %s257
      %p259 = scmp.eq.s32.totalorder %s44, 0
      %p260 = por %p258, %p259
      %s261 = ssub.s32 %s46, %s53
      %p262 = scmp.eq.s32.totalorder %s261, 0
      %s264 = sadd.s32 %s263, 1
      %s265 = scalar_select %p262, %s263, %s264
      %p268 = pneg %p262
      %p269 = scmp.eq.s32.totalorder %s38, 3
      %p270 = por %p268, %p269
      %p271 = scmp.ne.s32.totalorder %s263, %s266
      %p272 = scmp.eq.s32.totalorder %s38, 0
      %p273 = por %p271, %p272
      %p274 = scmp.ne.s32.totalorder %s263, %s266
      %p275 = scmp.eq.s32.totalorder %s43, 3
      %p276 = por %p274, %p275
      %p277 = scmp.ne.s32.totalorder %s266, %s267
      %p278 = scmp.eq.s32.totalorder %s43, 0
      %p279 = por %p277, %p278
      %p280 = scmp.ne.s32.totalorder %s266, %s267
      %p281 = scmp.eq.s32.totalorder %s44, 3
      %p282 = por %p280, %p281
      %p284 = scmp.ne.s32.totalorder %s267, %s283
      %p285 = scmp.eq.s32.totalorder %s44, 0
      %p286 = por %p284, %p285
      %s287 = ssub.s32 %s46, %s53
      %p288 = scmp.eq.s32.totalorder %s287, 0
      %s290 = sadd.s32 %s289, 1
      %s291 = scalar_select %p288, %s289, %s290
      %p294 = pneg %p288
      %p295 = scmp.eq.s32.totalorder %s38, 3
      %p296 = por %p294, %p295
      %p297 = scmp.ne.s32.totalorder %s289, %s292
      %p298 = scmp.eq.s32.totalorder %s38, 0
      %p299 = por %p297, %p298
      %p300 = scmp.ne.s32.totalorder %s289, %s292
      %p301 = scmp.eq.s32.totalorder %s43, 3
      %p302 = por %p300, %p301
      %p303 = scmp.ne.s32.totalorder %s292, %s293
      %p304 = scmp.eq.s32.totalorder %s43, 0
      %p305 = por %p303, %p304
      %p306 = scmp.ne.s32.totalorder %s292, %s293
      %p307 = scmp.eq.s32.totalorder %s44, 3
      %p308 = por %p306, %p307
      %p310 = scmp.ne.s32.totalorder %s293, %s309
      %p311 = scmp.eq.s32.totalorder %s44, 0
      %p312 = por %p310, %p311
      %s313 = ssub.s32 %s46, %s53
      %p314 = scmp.eq.s32.totalorder %s313, 0
      %s316 = sadd.s32 %s315, 1
      %s317 = scalar_select %p314, %s315, %s316
      %p320 = pneg %p314
      %p321 = scmp.eq.s32.totalorder %s38, 3
      %p322 = por %p320, %p321
      %p323 = scmp.ne.s32.totalorder %s315, %s318
      %p324 = scmp.eq.s32.totalorder %s38, 0
      %p325 = por %p323, %p324
      %p326 = scmp.ne.s32.totalorder %s315, %s318
      %p327 = scmp.eq.s32.totalorder %s43, 3
      %p328 = por %p326, %p327
      %p329 = scmp.ne.s32.totalorder %s318, %s319
      %p330 = scmp.eq.s32.totalorder %s43, 0
      %p331 = por %p329, %p330
      %p332 = scmp.ne.s32.totalorder %s318, %s319
      %p333 = scmp.eq.s32.totalorder %s44, 3
      %p334 = por %p332, %p333
      %p336 = scmp.ne.s32.totalorder %s319, %s335
      %p337 = scmp.eq.s32.totalorder %s44, 0
      %p338 = por %p336, %p337
      %s339 = ssub.s32 %s46, %s53
      %p340 = scmp.eq.s32.totalorder %s339, 0
      %s342 = sadd.s32 %s341, 1
      %s343 = scalar_select %p340, %s341, %s342
      %p346 = pneg %p340
      %p347 = scmp.eq.s32.totalorder %s38, 3
      %p348 = por %p346, %p347
      %p349 = scmp.ne.s32.totalorder %s341, %s344
      %p350 = scmp.eq.s32.totalorder %s38, 0
      %p351 = por %p349, %p350
      %p352 = scmp.ne.s32.totalorder %s341, %s344
      %p353 = scmp.eq.s32.totalorder %s43, 3
      %p354 = por %p352, %p353
      %p355 = scmp.ne.s32.totalorder %s344, %s345
      %p356 = scmp.eq.s32.totalorder %s43, 0
      %p357 = por %p355, %p356
      %p358 = scmp.ne.s32.totalorder %s344, %s345
      %p359 = scmp.eq.s32.totalorder %s44, 3
      %p360 = por %p358, %p359
      %p362 = scmp.ne.s32.totalorder %s345, %s361
      %p363 = scmp.eq.s32.totalorder %s44, 0
      %p364 = por %p362, %p363
      %s365 = ssub.s32 %s46, %s53
      %p366 = scmp.eq.s32.totalorder %s365, 0
      %s368 = sadd.s32 %s367, 1
      %s369 = scalar_select %p366, %s367, %s368
      %p372 = pneg %p366
      %p373 = scmp.eq.s32.totalorder %s38, 3
      %p374 = por %p372, %p373
      %p375 = scmp.ne.s32.totalorder %s367, %s370
      %p376 = scmp.eq.s32.totalorder %s38, 0
      %p377 = por %p375, %p376
      %p378 = scmp.ne.s32.totalorder %s367, %s370
      %p379 = scmp.eq.s32.totalorder %s43, 3
      %p380 = por %p378, %p379
      %p381 = scmp.ne.s32.totalorder %s370, %s371
      %p382 = scmp.eq.s32.totalorder %s43, 0
      %p383 = por %p381, %p382
      %p384 = scmp.ne.s32.totalorder %s370, %s371
      %p385 = scmp.eq.s32.totalorder %s44, 3
      %p386 = por %p384, %p385
      %p388 = scmp.ne.s32.totalorder %s371, %s387
      %p389 = scmp.eq.s32.totalorder %s44, 0
      %p390 = por %p388, %p389
      %s391 = ssub.s32 %s46, %s53
      %p392 = scmp.eq.s32.totalorder %s391, 0
      %s394 = sadd.s32 %s393, 1
      %s395 = scalar_select %p392, %s393, %s394
      %p398 = pneg %p392
      %p399 = scmp.eq.s32.totalorder %s38, 3
      %p400 = por %p398, %p399
      %p401 = scmp.ne.s32.totalorder %s393, %s396
      %p402 = scmp.eq.s32.totalorder %s38, 0
      %p403 = por %p401, %p402
      %p404 = scmp.ne.s32.totalorder %s393, %s396
      %p405 = scmp.eq.s32.totalorder %s43, 3
      %p406 = por %p404, %p405
      %p407 = scmp.ne.s32.totalorder %s396, %s397
      %p408 = scmp.eq.s32.totalorder %s43, 0
      %p409 = por %p407, %p408
      %p410 = scmp.ne.s32.totalorder %s396, %s397
      %p411 = scmp.eq.s32.totalorder %s44, 3
      %p412 = por %p410, %p411
      %p414 = scmp.ne.s32.totalorder %s397, %s413
      %p415 = scmp.eq.s32.totalorder %s44, 0
      %p416 = por %p414, %p415
      %s417 = ssub.s32 %s45, %s57
      %p418 = scmp.eq.s32.totalorder %s417, 0
      %s420 = sadd.s32 %s419, 1
      %s421 = scalar_select %p418, %s419, %s420
      %p424 = pneg %p418
      %p425 = scmp.eq.s32.totalorder %s38, 3
      %p426 = por %p424, %p425
      %p427 = scmp.ne.s32.totalorder %s419, %s422
      %p428 = scmp.eq.s32.totalorder %s38, 0
      %p429 = por %p427, %p428
      %p430 = scmp.ne.s32.totalorder %s419, %s422
      %p431 = scmp.eq.s32.totalorder %s43, 3
      %p432 = por %p430, %p431
      %p433 = scmp.ne.s32.totalorder %s422, %s423
      %p434 = scmp.eq.s32.totalorder %s43, 0
      %p435 = por %p433, %p434
      %p436 = scmp.ne.s32.totalorder %s422, %s423
      %p437 = scmp.eq.s32.totalorder %s44, 3
      %p438 = por %p436, %p437
      %p440 = scmp.ne.s32.totalorder %s423, %s439
      %p441 = scmp.eq.s32.totalorder %s44, 0
      %p442 = por %p440, %p441
      %p443 = scmp.le.s32.totalorder 1, %s38
      %p444 = scmp.lt.s32.totalorder %s38, 5
      %p445 = pnand %p443, %p444
      %p446 = pneg %p445
      // Predicated region
      $region9: #{tpu_custom_call.1} parent=5 // pred_check
        _
      $region10: #{tpu_custom_call.1} parent=5 // pred_check_branch
        %448 = sbr.rel (%p445) target = $region12
      $region11: #{tpu_custom_call.1} parent=5 // pred_region
        %s449 = ssub.s32 %s38, 1
        // Predicated region
        $region13: #{tpu_custom_call.1} parent=11 // pred_check
          %p450 = pneg %p97
        $region14: #{tpu_custom_call.1} parent=11 // pred_check_branch
          %452 = sbr.rel (%p450) target = $region16
        $region15: #{tpu_custom_call.1} parent=11 // pred_region
          _
        $region16: #{tpu_custom_call.1} parent=11 // pred_fallthru
          _
      $region12: #{tpu_custom_call.1} parent=5 // pred_fallthru
        _
      %p453 = scmp.lt.s32.totalorder %s38, 4
      // Predicated region
      $region17: #{tpu_custom_call.1} parent=5 // pred_check
        %p454 = pneg %p453
      $region18: #{tpu_custom_call.1} parent=5 // pred_check_branch
        %456 = sbr.rel (%p454) target = $region20
      $region19: #{tpu_custom_call.1} parent=5 // pred_region
        // Predicated region
        $region21: #{tpu_custom_call.1} parent=19 // pred_check
          %p457 = pneg %p70
        $region22: #{tpu_custom_call.1} parent=19 // pred_check_branch
          %459 = sbr.rel (%p457) target = $region24
        $region23: #{tpu_custom_call.1} parent=19 // pred_region
          %s460 = smul.u32 2, %s45
          %p461 = scmp.lt.s32.totalorder %s460, 3
          %s462 = scalar_select %p461, %s460, 3
          %s463 = smul.addr %s462, 8
          %s464 = scalar_lea.vmem %s0, %s463
          %s465 = smul.u32 2, %s45
        $region24: #{tpu_custom_call.1} parent=19 // pred_fallthru
          _
        // Predicated region
        $region25: #{tpu_custom_call.1} parent=19 // pred_check
          %p466 = pneg %p117
        $region26: #{tpu_custom_call.1} parent=19 // pred_check_branch
          %468 = sbr.rel (%p466) target = $region28
        $region27: #{tpu_custom_call.1} parent=19 // pred_region
          %s469 = sand.u32 %s107, 1
          %s470 = scalar_lea.sflag [#allocation4], %s469
          %s471 = sand.u32 %s107, 1
          %s472 = smul.addr %s471, 4
          %s473 = scalar_lea.vmem [#allocation3], %s472
          %475 = vsyncadd %s470, 0
          %s476 = smul.addr %s46, 4
          %s477 = scalar_lea.hbm %s2, %s476
          %s479 = sshll.u32 %s477, 4
          %s480 = int_to_ptr.hbm [resolvable:$true] %s479
          %s481 = sshll.u32 %s473, 4
          %s482 = int_to_ptr.vmem [resolvable:$true] %s481
          %484 = dma.hbm_to_vmem [thread:$0]  %s480, 64, %s482, %s470
        $region28: #{tpu_custom_call.1} parent=19 // pred_fallthru
          _
        // Predicated region
        $region29: #{tpu_custom_call.1} parent=19 // pred_check
          %p485 = pneg %p143
        $region30: #{tpu_custom_call.1} parent=19 // pred_check_branch
          %487 = sbr.rel (%p485) target = $region32
        $region31: #{tpu_custom_call.1} parent=19 // pred_region
          %s488 = sand.u32 %s38, 1
          %s489 = scalar_lea.sflag [#allocation7], %s488
          %s490 = sand.u32 %s133, 1
          %s491 = scalar_lea.vmem [#allocation6], %s490
          %493 = vsyncadd %s489, 0
          %s494 = scalar_lea.hbm %s3, %s46
          %s496 = sshll.u32 %s494, 4
          %s497 = int_to_ptr.hbm [resolvable:$true] %s496
          %s498 = sshll.u32 %s491, 4
          %s499 = int_to_ptr.vmem [resolvable:$true] %s498
          %501 = dma.hbm_to_vmem [thread:$0]  %s497, 16, %s499, %s489
        $region32: #{tpu_custom_call.1} parent=19 // pred_fallthru
          _
        // Predicated region
        $region33: #{tpu_custom_call.1} parent=19 // pred_check
          %p502 = pneg %p169
        $region34: #{tpu_custom_call.1} parent=19 // pred_check_branch
          %504 = sbr.rel (%p502) target = $region36
        $region35: #{tpu_custom_call.1} parent=19 // pred_region
          %s505 = sand.u32 %s38, 1
          %s506 = scalar_lea.sflag [#allocation7], %s505
          %s507 = sand.u32 %s159, 1
          %s508 = smul.addr %s507, 4
          %s509 = scalar_lea.vmem [#allocation8], %s508
          %511 = vsyncadd %s506, 0
          %s512 = smul.addr %s46, 4
          %s513 = scalar_lea.hbm %s4, %s512
          %s515 = sshll.u32 %s513, 4
          %s516 = int_to_ptr.hbm [resolvable:$true] %s515
          %s517 = sshll.u32 %s509, 4
          %s518 = int_to_ptr.vmem [resolvable:$true] %s517
          %520 = dma.hbm_to_vmem [thread:$0]  %s516, 64, %s518, %s506
        $region36: #{tpu_custom_call.1} parent=19 // pred_fallthru
          _
        // Predicated region
        $region37: #{tpu_custom_call.1} parent=19 // pred_check
          %p521 = pneg %p195
        $region38: #{tpu_custom_call.1} parent=19 // pred_check_branch
          %523 = sbr.rel (%p521) target = $region40
        $region39: #{tpu_custom_call.1} parent=19 // pred_region
          %s524 = sand.u32 %s38, 1
          %s525 = scalar_lea.sflag [#allocation10], %s524
          %s526 = sand.u32 %s185, 1
          %s527 = scalar_lea.vmem [#allocation9], %s526
          %529 = vsyncadd %s525, 0
          %s530 = scalar_lea.hbm %s5, %s46
          %s532 = sshll.u32 %s530, 4
          %s533 = int_to_ptr.hbm [resolvable:$true] %s532
          %s534 = sshll.u32 %s527, 4
          %s535 = int_to_ptr.vmem [resolvable:$true] %s534
          %537 = dma.hbm_to_vmem [thread:$0]  %s533, 16, %s535, %s525
        $region40: #{tpu_custom_call.1} parent=19 // pred_fallthru
          _
        // Predicated region
        $region41: #{tpu_custom_call.1} parent=19 // pred_check
          %p538 = pneg %p221
        $region42: #{tpu_custom_call.1} parent=19 // pred_check_branch
          %540 = sbr.rel (%p538) target = $region44
        $region43: #{tpu_custom_call.1} parent=19 // pred_region
          %s541 = sand.u32 %s38, 1
          %s542 = scalar_lea.sflag [#allocation10], %s541
          %s543 = sand.u32 %s211, 1
          %s544 = scalar_lea.vmem [#allocation11], %s543
          %546 = vsyncadd %s542, 0
          %s547 = scalar_lea.hbm %s6, %s46
          %s549 = sshll.u32 %s547, 4
          %s550 = int_to_ptr.hbm [resolvable:$true] %s549
          %s551 = sshll.u32 %s544, 4
          %s552 = int_to_ptr.vmem [resolvable:$true] %s551
          %554 = dma.hbm_to_vmem [thread:$0]  %s550, 16, %s552, %s542
        $region44: #{tpu_custom_call.1} parent=19 // pred_fallthru
          _
        // Predicated region
        $region45: #{tpu_custom_call.1} parent=19 // pred_check
          %p555 = pneg %p247
        $region46: #{tpu_custom_call.1} parent=19 // pred_check_branch
          %557 = sbr.rel (%p555) target = $region48
        $region47: #{tpu_custom_call.1} parent=19 // pred_region
          %s558 = sand.u32 %s38, 1
          %s559 = scalar_lea.sflag [#allocation13], %s558
          %s560 = sand.u32 %s237, 1
          %s561 = scalar_lea.vmem [#allocation12], %s560
          %563 = vsyncadd %s559, 0
          %s564 = scalar_lea.hbm %s7, %s46
          %s566 = sshll.u32 %s564, 4
          %s567 = int_to_ptr.hbm [resolvable:$true] %s566
          %s568 = sshll.u32 %s561, 4
          %s569 = int_to_ptr.vmem [resolvable:$true] %s568
          %571 = dma.hbm_to_vmem [thread:$0]  %s567, 16, %s569, %s559
        $region48: #{tpu_custom_call.1} parent=19 // pred_fallthru
          _
        // Predicated region
        $region49: #{tpu_custom_call.1} parent=19 // pred_check
          %p572 = pneg %p273
        $region50: #{tpu_custom_call.1} parent=19 // pred_check_branch
          %574 = sbr.rel (%p572) target = $region52
        $region51: #{tpu_custom_call.1} parent=19 // pred_region
          %s575 = sand.u32 %s38, 1
          %s576 = scalar_lea.sflag [#allocation13], %s575
          %s577 = sand.u32 %s263, 1
          %s578 = smul.addr %s577, 4
          %s579 = scalar_lea.vmem [#allocation14], %s578
          %581 = vsyncadd %s576, 0
          %s582 = smul.addr %s46, 4
          %s583 = scalar_lea.hbm %s8, %s582
          %s585 = sshll.u32 %s583, 4
          %s586 = int_to_ptr.hbm [resolvable:$true] %s585
          %s587 = sshll.u32 %s579, 4
          %s588 = int_to_ptr.vmem [resolvable:$true] %s587
          %590 = dma.hbm_to_vmem [thread:$0]  %s586, 64, %s588, %s576
        $region52: #{tpu_custom_call.1} parent=19 // pred_fallthru
          _
        // Predicated region
        $region53: #{tpu_custom_call.1} parent=19 // pred_check
          %p591 = pneg %p299
        $region54: #{tpu_custom_call.1} parent=19 // pred_check_branch
          %593 = sbr.rel (%p591) target = $region56
        $region55: #{tpu_custom_call.1} parent=19 // pred_region
          %s594 = sand.u32 %s38, 1
          %s595 = scalar_lea.sflag [#allocation16], %s594
          %s596 = sand.u32 %s289, 1
          %s597 = scalar_lea.vmem [#allocation15], %s596
          %599 = vsyncadd %s595, 0
          %s600 = scalar_lea.hbm %s9, %s46
          %s602 = sshll.u32 %s600, 4
          %s603 = int_to_ptr.hbm [resolvable:$true] %s602
          %s604 = sshll.u32 %s597, 4
          %s605 = int_to_ptr.vmem [resolvable:$true] %s604
          %607 = dma.hbm_to_vmem [thread:$0]  %s603, 16, %s605, %s595
        $region56: #{tpu_custom_call.1} parent=19 // pred_fallthru
          _
        // Predicated region
        $region57: #{tpu_custom_call.1} parent=19 // pred_check
          %p608 = pneg %p325
        $region58: #{tpu_custom_call.1} parent=19 // pred_check_branch
          %610 = sbr.rel (%p608) target = $region60
        $region59: #{tpu_custom_call.1} parent=19 // pred_region
          %p611 = scmp.lt.s32.totalorder %s46, 1
          %s612 = scalar_select %p611, %s46, 1
          %s613 = smul.addr %s612, 4
          %s614 = smul.addr %s613, 4
          %s615 = scalar_lea.vmem %s10, %s614
        $region60: #{tpu_custom_call.1} parent=19 // pred_fallthru
          _
        // Predicated region
        $region61: #{tpu_custom_call.1} parent=19 // pred_check
          %p616 = pneg %p351
        $region62: #{tpu_custom_call.1} parent=19 // pred_check_branch
          %618 = sbr.rel (%p616) target = $region64
        $region63: #{tpu_custom_call.1} parent=19 // pred_region
          %p619 = scmp.lt.s32.totalorder %s46, 1
          %s620 = scalar_select %p619, %s46, 1
          %s621 = scalar_lea.vmem %s11, %s620
        $region64: #{tpu_custom_call.1} parent=19 // pred_fallthru
          _
        // Predicated region
        $region65: #{tpu_custom_call.1} parent=19 // pred_check
          %p622 = pneg %p377
        $region66: #{tpu_custom_call.1} parent=19 // pred_check_branch
          %624 = sbr.rel (%p622) target = $region68
        $region67: #{tpu_custom_call.1} parent=19 // pred_region
          %s625 = sand.u32 %s38, 1
          %s626 = scalar_lea.sflag [#allocation16], %s625
          %s627 = sand.u32 %s367, 1
          %s628 = scalar_lea.vmem [#allocation17], %s627
          %630 = vsyncadd %s626, 0
          %s631 = scalar_lea.hbm %s12, %s46
          %s633 = sshll.u32 %s631, 4
          %s634 = int_to_ptr.hbm [resolvable:$true] %s633
          %s635 = sshll.u32 %s628, 4
          %s636 = int_to_ptr.vmem [resolvable:$true] %s635
          %638 = dma.hbm_to_vmem [thread:$0]  %s634, 16, %s636, %s626
        $region68: #{tpu_custom_call.1} parent=19 // pred_fallthru
          _
        // Predicated region
        $region69: #{tpu_custom_call.1} parent=19 // pred_check
          %p639 = pneg %p403
        $region70: #{tpu_custom_call.1} parent=19 // pred_check_branch
          %641 = sbr.rel (%p639) target = $region72
        $region71: #{tpu_custom_call.1} parent=19 // pred_region
          %p642 = scmp.lt.s32.totalorder %s46, 1
          %s643 = scalar_select %p642, %s46, 1
          %s644 = scalar_lea.vmem %s13, %s643
        $region72: #{tpu_custom_call.1} parent=19 // pred_fallthru
          _
      $region20: #{tpu_custom_call.1} parent=5 // pred_fallthru
        _
      %p645 = scmp.le.s32.totalorder 1, %s38
      %p646 = scmp.lt.s32.totalorder %s38, 5
      %p647 = pnand %p645, %p646
      %p648 = pneg %p647
      // Predicated region
      $region73: #{tpu_custom_call.1} parent=5 // pred_check
        _
      $region74: #{tpu_custom_call.1} parent=5 // pred_check_branch
        %650 = sbr.rel (%p647) target = $region76
      $region75: #{tpu_custom_call.1} parent=5 // pred_region
        %s651 = ssub.s32 %s38, 1
        %s652 = sand.u32 %s110, 1
        %s653 = scalar_lea.sflag [#allocation4], %s652
        %s654 = sand.u32 %s110, 1
        %s655 = smul.addr %s654, 4
        %s656 = scalar_lea.vmem [#allocation3], %s655
        // Predicated region
        $region77: #{tpu_custom_call.1} parent=75 // pred_check
          %p657 = pneg %p123
        $region78: #{tpu_custom_call.1} parent=75 // pred_check_branch
          %659 = sbr.rel (%p657) target = $region80
        $region79: #{tpu_custom_call.1} parent=75 // pred_region
          %661 = dma.done %s653, 64
        $region80: #{tpu_custom_call.1} parent=75 // pred_fallthru
          _
        %s662 = sand.u32 %s43, 1
        %s663 = scalar_lea.sflag [#allocation7], %s662
        %s664 = sand.u32 %s136, 1
        %s665 = scalar_lea.vmem [#allocation6], %s664
        // Predicated region
        $region81: #{tpu_custom_call.1} parent=75 // pred_check
          %p666 = pneg %p149
        $region82: #{tpu_custom_call.1} parent=75 // pred_check_branch
          %668 = sbr.rel (%p666) target = $region84
        $region83: #{tpu_custom_call.1} parent=75 // pred_region
          %670 = dma.done %s663, 16
        $region84: #{tpu_custom_call.1} parent=75 // pred_fallthru
          _
        %s671 = sand.u32 %s43, 1
        %s672 = scalar_lea.sflag [#allocation7], %s671
        %s673 = sand.u32 %s162, 1
        %s674 = smul.addr %s673, 4
        %s675 = scalar_lea.vmem [#allocation8], %s674
        // Predicated region
        $region85: #{tpu_custom_call.1} parent=75 // pred_check
          %p676 = pneg %p175
        $region86: #{tpu_custom_call.1} parent=75 // pred_check_branch
          %678 = sbr.rel (%p676) target = $region88
        $region87: #{tpu_custom_call.1} parent=75 // pred_region
          %680 = dma.done %s672, 64
        $region88: #{tpu_custom_call.1} parent=75 // pred_fallthru
          _
        %s681 = sand.u32 %s43, 1
        %s682 = scalar_lea.sflag [#allocation10], %s681
        %s683 = sand.u32 %s188, 1
        %s684 = scalar_lea.vmem [#allocation9], %s683
        // Predicated region
        $region89: #{tpu_custom_call.1} parent=75 // pred_check
          %p685 = pneg %p201
        $region90: #{tpu_custom_call.1} parent=75 // pred_check_branch
          %687 = sbr.rel (%p685) target = $region92
        $region91: #{tpu_custom_call.1} parent=75 // pred_region
          %689 = dma.done %s682, 16
        $region92: #{tpu_custom_call.1} parent=75 // pred_fallthru
          _
        %s690 = sand.u32 %s43, 1
        %s691 = scalar_lea.sflag [#allocation10], %s690
        %s692 = sand.u32 %s214, 1
        %s693 = scalar_lea.vmem [#allocation11], %s692
        // Predicated region
        $region93: #{tpu_custom_call.1} parent=75 // pred_check
          %p694 = pneg %p227
        $region94: #{tpu_custom_call.1} parent=75 // pred_check_branch
          %696 = sbr.rel (%p694) target = $region96
        $region95: #{tpu_custom_call.1} parent=75 // pred_region
          %698 = dma.done %s691, 16
        $region96: #{tpu_custom_call.1} parent=75 // pred_fallthru
          _
        %s699 = sand.u32 %s43, 1
        %s700 = scalar_lea.sflag [#allocation13], %s699
        %s701 = sand.u32 %s240, 1
        %s702 = scalar_lea.vmem [#allocation12], %s701
        // Predicated region
        $region97: #{tpu_custom_call.1} parent=75 // pred_check
          %p703 = pneg %p253
        $region98: #{tpu_custom_call.1} parent=75 // pred_check_branch
          %705 = sbr.rel (%p703) target = $region100
        $region99: #{tpu_custom_call.1} parent=75 // pred_region
          %707 = dma.done %s700, 16
        $region100: #{tpu_custom_call.1} parent=75 // pred_fallthru
          _
        %s708 = sand.u32 %s43, 1
        %s709 = scalar_lea.sflag [#allocation13], %s708
        %s710 = sand.u32 %s266, 1
        %s711 = smul.addr %s710, 4
        %s712 = scalar_lea.vmem [#allocation14], %s711
        // Predicated region
        $region101: #{tpu_custom_call.1} parent=75 // pred_check
          %p713 = pneg %p279
        $region102: #{tpu_custom_call.1} parent=75 // pred_check_branch
          %715 = sbr.rel (%p713) target = $region104
        $region103: #{tpu_custom_call.1} parent=75 // pred_region
          %717 = dma.done %s709, 64
        $region104: #{tpu_custom_call.1} parent=75 // pred_fallthru
          _
        %s718 = sand.u32 %s43, 1
        %s719 = scalar_lea.sflag [#allocation16], %s718
        %s720 = sand.u32 %s292, 1
        %s721 = scalar_lea.vmem [#allocation15], %s720
        // Predicated region
        $region105: #{tpu_custom_call.1} parent=75 // pred_check
          %p722 = pneg %p305
        $region106: #{tpu_custom_call.1} parent=75 // pred_check_branch
          %724 = sbr.rel (%p722) target = $region108
        $region107: #{tpu_custom_call.1} parent=75 // pred_region
          %726 = dma.done %s719, 16
        $region108: #{tpu_custom_call.1} parent=75 // pred_fallthru
          _
        %s727 = sand.u32 %s43, 1
        %s728 = scalar_lea.sflag [#allocation16], %s727
        %s729 = sand.u32 %s370, 1
        %s730 = scalar_lea.vmem [#allocation17], %s729
        // Predicated region
        $region109: #{tpu_custom_call.1} parent=75 // pred_check
          %p731 = pneg %p383
        $region110: #{tpu_custom_call.1} parent=75 // pred_check_branch
          %733 = sbr.rel (%p731) target = $region112
        $region111: #{tpu_custom_call.1} parent=75 // pred_region
          %735 = dma.done %s728, 16
        $region112: #{tpu_custom_call.1} parent=75 // pred_fallthru
          _
        %s736 = smul.u32 2, %s47
        %p737 = scmp.lt.s32.totalorder %s736, 3
        %s738 = scalar_select %p737, %s736, 3
        %s739 = smul.addr %s738, 8
        %s740 = scalar_lea.vmem %s0, %s739
        %p741 = pneg %p76
        %p742 = pneg %p73
        %p743 = pneg %p97
        %p744 = pneg %p94
        %s745 = sand.u32 %s110, 1
        %s746 = scalar_lea.sflag [#allocation4], %s745
        %s747 = sand.u32 %s110, 1
        %s748 = smul.addr %s747, 4
        %s749 = scalar_lea.vmem [#allocation3], %s748
        %p750 = pneg %p123
        %p751 = pneg %p120
        %s752 = sand.u32 %s43, 1
        %s753 = scalar_lea.sflag [#allocation7], %s752
        %s754 = sand.u32 %s136, 1
        %s755 = scalar_lea.vmem [#allocation6], %s754
        %p756 = pneg %p149
        %p757 = pneg %p146
        %s758 = sand.u32 %s43, 1
        %s759 = scalar_lea.sflag [#allocation7], %s758
        %s760 = sand.u32 %s162, 1
        %s761 = smul.addr %s760, 4
        %s762 = scalar_lea.vmem [#allocation8], %s761
        %p763 = pneg %p175
        %p764 = pneg %p172
        %s765 = sand.u32 %s43, 1
        %s766 = scalar_lea.sflag [#allocation10], %s765
        %s767 = sand.u32 %s188, 1
        %s768 = scalar_lea.vmem [#allocation9], %s767
        %p769 = pneg %p201
        %p770 = pneg %p198
        %s771 = sand.u32 %s43, 1
        %s772 = scalar_lea.sflag [#allocation10], %s771
        %s773 = sand.u32 %s214, 1
        %s774 = scalar_lea.vmem [#allocation11], %s773
        %p775 = pneg %p227
        %p776 = pneg %p224
        %s777 = sand.u32 %s43, 1
        %s778 = scalar_lea.sflag [#allocation13], %s777
        %s779 = sand.u32 %s240, 1
        %s780 = scalar_lea.vmem [#allocation12], %s779
        %p781 = pneg %p253
        %p782 = pneg %p250
        %s783 = sand.u32 %s43, 1
        %s784 = scalar_lea.sflag [#allocation13], %s783
        %s785 = sand.u32 %s266, 1
        %s786 = smul.addr %s785, 4
        %s787 = scalar_lea.vmem [#allocation14], %s786
        %p788 = pneg %p279
        %p789 = pneg %p276
        %s790 = sand.u32 %s43, 1
        %s791 = scalar_lea.sflag [#allocation16], %s790
        %s792 = sand.u32 %s292, 1
        %s793 = scalar_lea.vmem [#allocation15], %s792
        %p794 = pneg %p305
        %p795 = pneg %p302
        %p796 = scmp.lt.s32.totalorder %s48, 1
        %s797 = scalar_select %p796, %s48, 1
        %s798 = smul.addr %s797, 4
        %s799 = smul.addr %s798, 4
        %s800 = scalar_lea.vmem %s10, %s799
        %p801 = pneg %p331
        %p802 = pneg %p328
        %p803 = scmp.lt.s32.totalorder %s48, 1
        %s804 = scalar_select %p803, %s48, 1
        %s805 = scalar_lea.vmem %s11, %s804
        %p806 = pneg %p357
        %p807 = pneg %p354
        %s808 = sand.u32 %s43, 1
        %s809 = scalar_lea.sflag [#allocation16], %s808
        %s810 = sand.u32 %s370, 1
        %s811 = scalar_lea.vmem [#allocation17], %s810
        %p812 = pneg %p383
        %p813 = pneg %p380
        %p814 = scmp.lt.s32.totalorder %s48, 1
        %s815 = scalar_select %p814, %s48, 1
        %s816 = scalar_lea.vmem %s13, %s815
        %p817 = pneg %p409
        %p818 = pneg %p406
        %p819 = pneg %p435
        %p820 = pneg %p432
        %s821 = sand.u32 %s422, 1
        %s822 = scalar_lea.sflag [#allocation5], %s821
        %s823 = sand.u32 %s422, 1
        %s824 = smul.addr %s823, 16
        %s825 = scalar_lea.vmem [#allocation18], %s824
        %s826 = smul.u32 2, %s47
        %p827 = scmp.lt.s32.totalorder %s826, 3
        %s828 = scalar_select %p827, %s826, 3
        %s829 = smul.addr %s828, 8
        %s830 = scalar_lea.vmem %s0, %s829
        %s831 = smul.u32 2, %s47
        %p832 = scmp.lt.s32.totalorder %s48, 1
        %s833 = scalar_select %p832, %s48, 1
        %s834 = smul.addr %s833, 4
        %s835 = smul.addr %s834, 4
        %s836 = scalar_lea.vmem %s10, %s835
        %p837 = scmp.lt.s32.totalorder %s48, 1
        %s838 = scalar_select %p837, %s48, 1
        %s839 = scalar_lea.vmem %s11, %s838
        %p840 = scmp.lt.s32.totalorder %s48, 1
        %s841 = scalar_select %p840, %s48, 1
        %s842 = scalar_lea.vmem %s13, %s841
        %s843 = smul.u32 2, %s47
        %p845 = scmp.eq.s32.totalorder %s48, 0
        // Predicated region
        $region113: #{tpu_custom_call.1} parent=75 // pred_check
          %p846 = pneg %p845
        $region114: #{tpu_custom_call.1} parent=75 // pred_check_branch
          %848 = sbr.rel (%p846) target = $region116
        $region115: #{tpu_custom_call.1} parent=75 // pred_region
          %v849 = vld [vmem:[%s830] sm:$0xff]
          %v850 = vld [vmem:[%s830 + $0x8] sm:$0xff]
          %v851 = vmul.f32 %v849, 2.828427
          %v852 = vmul.f32 %v850, 2.828427
          %v853 = vld [vmem:[%s1] sm:$0xff]
          %v854 = vadd.f32 %v851, %v853
          %v855 = vadd.f32 %v852, %v853
          %vm856 = vcmask 64512
          %857 = vst.msk [vmem:[#allocation2] sm:$0xff] %vm856, %v854
          %858 = vst.msk [vmem:[#allocation2 + $0x8] sm:$0xff] %vm856, %v855
        $region116: #{tpu_custom_call.1} parent=75 // pred_fallthru
          _
        %v859 = vld [vmem:[#allocation2] sm:$0xff]
        %v860 = vld [vmem:[#allocation2 + $0x8] sm:$0xff]
        %v861 = vpack.c.bf16 %v860, %v859
        %v862 = vld [vmem:[%s656] sm:$0xf]
        %v863 = vld [vmem:[%s665] sm:$0x1]
        %v865 = vperm.slane %v863, 0
        %vm867 = vcmask 64512
        %v869 = vsel %vm867, %v861, 0
        %vm871 = vcmask 1043456
        %v873 = vsel %vm871, %v862, 0
        %875 = vmatpush.bf16.msra.mxu0 0
        %876 = vmatpush.bf16.msra.mxu0 0
        %877 = vmatpush.bf16.msra.mxu0 0
        %878 = vmatpush.bf16.msra.mxu0 0
        %879 = vmatpush.bf16.msra.mxu0 0
        %880 = vmatpush.bf16.msra.mxu0 0
        %881 = vmatpush.bf16.msra.mxu0 0
        %882 = vmatpush.bf16.msra.mxu0 %v873
        %883 = vmatmul.bf16.gmra.mxu0 %v869
        %v884 = vpop.f32.mrf.mxu0
        %v885 = vadd.f32 %v865, %v884
        %v886 = vpop.f32.mrf.mxu0
        %v887 = vadd.f32 %v865, %v886
        %888 = vdwg.mxu0
        %v889 = vpack.c.bf16 %v885, %v885
        %v890 = vpack.c.bf16 %v887, %v887
        %v892 = vunpack.c.l.b16 %v889
        %v893 = vpack.c.b16 %v892, %v892
        %894 = vrot.lane.b32.xlu0 %v893, 120
        %v895 = vpop.permute.xlu0 %894
        %vm896 = vcmask 31744
        %v898 = vsel %vm896, %v889, 0
        %v901 = vsel %vm896, %v895, 0
        %903 = vmatpush.bf16.xpose.msra.mxu0 0
        %904 = vmatpush.bf16.xpose.msra.mxu0 0
        %905 = vmatpush.bf16.xpose.msra.mxu0 0
        %906 = vmatpush.bf16.xpose.msra.mxu0 0
        %907 = vmatpush.bf16.xpose.msra.mxu0 0
        %908 = vmatpush.bf16.xpose.msra.mxu0 0
        %909 = vmatpush.bf16.xpose.msra.mxu0 0
        %910 = vmatpush.bf16.xpose.msra.mxu0 %v901
        %911 = vmatmul.bf16.gmra.mxu0 %v898
        %v912 = vpop.f32.mrf.mxu0
        %v913 = vadd.f32 0.0, %v912
        %v914 = vpop.f32.mrf.mxu0
        %915 = vdwg.mxu0
        %v917 = vunpack.c.l.b16 %v890
        %v918 = vpack.c.b16 %v917, %v917
        %919 = vrot.lane.b32.xlu0 %v918, 120
        %v920 = vpop.permute.xlu0 %919
        %v922 = vsel %vm896, %v890, 0
        %v925 = vsel %vm896, %v920, 0
        %927 = vmatpush.bf16.xpose.msra.mxu0 0
        %928 = vmatpush.bf16.xpose.msra.mxu0 0
        %929 = vmatpush.bf16.xpose.msra.mxu0 0
        %930 = vmatpush.bf16.xpose.msra.mxu0 0
        %931 = vmatpush.bf16.xpose.msra.mxu0 0
        %932 = vmatpush.bf16.xpose.msra.mxu0 0
        %933 = vmatpush.bf16.xpose.msra.mxu0 0
        %934 = vmatpush.bf16.xpose.msra.mxu0 %v925
        %935 = vmatmul.bf16.gmra.mxu0 %v922
        %v936 = vpop.f32.mrf.mxu0
        %v937 = vadd.f32 0.0, %v936
        %v938 = vpop.f32.mrf.mxu0
        %939 = vdwg.mxu0
        %v940 = vsel %vm867, %v913, -inf
        %941 = vmax.xlane.f32.xlu0 %v940
        %v942 = vpop.xlane.xlu0 %941
        %v943 = vsel %vm867, %v937, -inf
        %944 = vmax.xlane.f32.xlu0 %v943
        %v945 = vpop.xlane.xlu0 %944
        %v946 = vsub.f32 %v913, %v942
        %v947 = vsub.f32 %v937, %v945
        %v948 = vmul.f32 %v946, 1.442695
        %v949 = vpow.pop %v948
        %v950 = vmul.f32 %v947, 1.442695
        %v951 = vpow.pop %v950
        %v952 = vsel %vm867, %v949, 0.0
        %953 = vadd.xlane.f32.xlu0 %v952
        %v954 = vpop.xlane.xlu0 %953
        %v955 = vsel %vm867, %v951, 0.0
        %956 = vadd.xlane.f32.xlu0 %v955
        %v957 = vpop.xlane.xlu0 %956
        %v958 = vrcp.pop %v954
        %v959 = vrcp.pop %v957
        %v960 = vmul.f32 %v949, %v958
        %v961 = vmul.f32 %v951, %v959
        %v962 = vpack.c.bf16 %v960, %v960
        %v963 = vpack.c.bf16 %v961, %v961
        %964 = vrot.lane.b32.xlu0 %v893, 112
        %v965 = vpop.permute.xlu0 %964
        %v967 = vsel %vm867, %v962, 0
        %v970 = vsel %vm871, %v965, 0
        %972 = vmatpush.bf16.msra.mxu0 0
        %973 = vmatpush.bf16.msra.mxu0 0
        %974 = vmatpush.bf16.msra.mxu0 0
        %975 = vmatpush.bf16.msra.mxu0 0
        %976 = vmatpush.bf16.msra.mxu0 0
        %977 = vmatpush.bf16.msra.mxu0 0
        %978 = vmatpush.bf16.msra.mxu0 0
        %979 = vmatpush.bf16.msra.mxu0 %v970
        %980 = vmatmul.bf16.gmra.mxu0 %v967
        %v981 = vpop.f32.mrf.mxu0
        %v982 = vadd.f32 0.0, %v981
        %v983 = vpop.f32.mrf.mxu0
        %984 = vdwg.mxu0
        %985 = vrot.lane.b32.xlu0 %v918, 112
        %v986 = vpop.permute.xlu0 %985
        %v988 = vsel %vm867, %v963, 0
        %v991 = vsel %vm871, %v986, 0
        %993 = vmatpush.bf16.msra.mxu0 0
        %994 = vmatpush.bf16.msra.mxu0 0
        %995 = vmatpush.bf16.msra.mxu0 0
        %996 = vmatpush.bf16.msra.mxu0 0
        %997 = vmatpush.bf16.msra.mxu0 0
        %998 = vmatpush.bf16.msra.mxu0 0
        %999 = vmatpush.bf16.msra.mxu0 0
        %1000 = vmatpush.bf16.msra.mxu0 %v991
        %1001 = vmatmul.bf16.gmra.mxu0 %v988
        %v1002 = vpop.f32.mrf.mxu0
        %v1003 = vadd.f32 0.0, %v1002
        %v1004 = vpop.f32.mrf.mxu0
        %1005 = vdwg.mxu0
        %1006 = vrot.lane.b32.xlu0 %v893, 124
        %v1007 = vpop.permute.xlu0 %1006
        %1008 = vrot.lane.b32.xlu0 %v893, 116
        %v1009 = vpop.permute.xlu0 %1008
        %v1011 = vsel %vm896, %v1007, 0
        %v1014 = vsel %vm896, %v1009, 0
        %1016 = vmatpush.bf16.xpose.msra.mxu0 0
        %1017 = vmatpush.bf16.xpose.msra.mxu0 0
        %1018 = vmatpush.bf16.xpose.msra.mxu0 0
        %1019 = vmatpush.bf16.xpose.msra.mxu0 0
        %1020 = vmatpush.bf16.xpose.msra.mxu0 0
        %1021 = vmatpush.bf16.xpose.msra.mxu0 0
        %1022 = vmatpush.bf16.xpose.msra.mxu0 0
        %1023 = vmatpush.bf16.xpose.msra.mxu0 %v1014
        %1024 = vmatmul.bf16.gmra.mxu0 %v1011
        %v1025 = vpop.f32.mrf.mxu0
        %v1026 = vadd.f32 0.0, %v1025
        %v1027 = vpop.f32.mrf.mxu0
        %1028 = vdwg.mxu0
        %1029 = vrot.lane.b32.xlu0 %v918, 124
        %v1030 = vpop.permute.xlu0 %1029
        %1031 = vrot.lane.b32.xlu0 %v918, 116
        %v1032 = vpop.permute.xlu0 %1031
        %v1034 = vsel %vm896, %v1030, 0
        %v1037 = vsel %vm896, %v1032, 0
        %1039 = vmatpush.bf16.xpose.msra.mxu0 0
        %1040 = vmatpush.bf16.xpose.msra.mxu0 0
        %1041 = vmatpush.bf16.xpose.msra.mxu0 0
        %1042 = vmatpush.bf16.xpose.msra.mxu0 0
        %1043 = vmatpush.bf16.xpose.msra.mxu0 0
        %1044 = vmatpush.bf16.xpose.msra.mxu0 0
        %1045 = vmatpush.bf16.xpose.msra.mxu0 0
        %1046 = vmatpush.bf16.xpose.msra.mxu0 %v1037
        %1047 = vmatmul.bf16.gmra.mxu0 %v1034
        %v1048 = vpop.f32.mrf.mxu0
        %v1049 = vadd.f32 0.0, %v1048
        %v1050 = vpop.f32.mrf.mxu0
        %1051 = vdwg.mxu0
        %v1052 = vsel %vm867, %v1026, -inf
        %1053 = vmax.xlane.f32.xlu0 %v1052
        %v1054 = vpop.xlane.xlu0 %1053
        %v1055 = vsel %vm867, %v1049, -inf
        %1056 = vmax.xlane.f32.xlu0 %v1055
        %v1057 = vpop.xlane.xlu0 %1056
        %v1058 = vsub.f32 %v1026, %v1054
        %v1059 = vsub.f32 %v1049, %v1057
        %v1060 = vmul.f32 %v1058, 1.442695
        %v1061 = vpow.pop %v1060
        %v1062 = vmul.f32 %v1059, 1.442695
        %v1063 = vpow.pop %v1062
        %v1064 = vsel %vm867, %v1061, 0.0
        %1065 = vadd.xlane.f32.xlu0 %v1064
        %v1066 = vpop.xlane.xlu0 %1065
        %v1067 = vsel %vm867, %v1063, 0.0
        %1068 = vadd.xlane.f32.xlu0 %v1067
        %v1069 = vpop.xlane.xlu0 %1068
        %v1070 = vrcp.pop %v1066
        %v1071 = vrcp.pop %v1069
        %v1072 = vmul.f32 %v1061, %v1070
        %v1073 = vmul.f32 %v1063, %v1071
        %v1074 = vpack.c.bf16 %v1072, %v1072
        %v1075 = vpack.c.bf16 %v1073, %v1073
        %1076 = vrot.lane.b32.xlu0 %v893, 108
        %v1077 = vpop.permute.xlu0 %1076
        %v1079 = vsel %vm867, %v1074, 0
        %v1082 = vsel %vm871, %v1077, 0
        %1084 = vmatpush.bf16.msra.mxu0 0
        %1085 = vmatpush.bf16.msra.mxu0 0
        %1086 = vmatpush.bf16.msra.mxu0 0
        %1087 = vmatpush.bf16.msra.mxu0 0
        %1088 = vmatpush.bf16.msra.mxu0 0
        %1089 = vmatpush.bf16.msra.mxu0 0
        %1090 = vmatpush.bf16.msra.mxu0 0
        %1091 = vmatpush.bf16.msra.mxu0 %v1082
        %1092 = vmatmul.bf16.gmra.mxu0 %v1079
        %v1093 = vpop.f32.mrf.mxu0
        %v1094 = vadd.f32 0.0, %v1093
        %v1095 = vpop.f32.mrf.mxu0
        %1096 = vdwg.mxu0
        %1097 = vrot.lane.b32.xlu0 %v918, 108
        %v1098 = vpop.permute.xlu0 %1097
        %v1100 = vsel %vm867, %v1075, 0
        %v1103 = vsel %vm871, %v1098, 0
        %1105 = vmatpush.bf16.msra.mxu0 0
        %1106 = vmatpush.bf16.msra.mxu0 0
        %1107 = vmatpush.bf16.msra.mxu0 0
        %1108 = vmatpush.bf16.msra.mxu0 0
        %1109 = vmatpush.bf16.msra.mxu0 0
        %1110 = vmatpush.bf16.msra.mxu0 0
        %1111 = vmatpush.bf16.msra.mxu0 0
        %1112 = vmatpush.bf16.msra.mxu0 %v1103
        %1113 = vmatmul.bf16.gmra.mxu0 %v1100
        %v1114 = vpop.f32.mrf.mxu0
        %v1115 = vadd.f32 0.0, %v1114
        %v1116 = vpop.f32.mrf.mxu0
        %1117 = vdwg.mxu0
        %1120 = vrot.lane.b32.xlu0 %v1094, 4
        %v1121 = vpop.permute.xlu0 %1120
        %1122 = vrot.lane.b32.xlu0 %v1115, 4
        %v1123 = vpop.permute.xlu0 %1122
        %v1126 = vsel %vm896, %v982, %v1121
        %v1127 = vsel %vm896, %v1003, %v1123
        %v1128 = vpack.c.bf16 %v1127, %v1126
        %v1129 = vld [vmem:[%s675] sm:$0xf]
        %v1130 = vld [vmem:[%s684] sm:$0x1]
        %v1132 = vperm.slane %v1130, 0
        %v1135 = vsel %vm867, %v1128, 0
        %v1138 = vsel %vm871, %v1129, 0
        %1140 = vmatpush.bf16.msra.mxu0 0
        %1141 = vmatpush.bf16.msra.mxu0 0
        %1142 = vmatpush.bf16.msra.mxu0 0
        %1143 = vmatpush.bf16.msra.mxu0 0
        %1144 = vmatpush.bf16.msra.mxu0 0
        %1145 = vmatpush.bf16.msra.mxu0 0
        %1146 = vmatpush.bf16.msra.mxu0 0
        %1147 = vmatpush.bf16.msra.mxu0 %v1138
        %1148 = vmatmul.bf16.gmra.mxu0 %v1135
        %v1149 = vpop.f32.mrf.mxu0
        %v1150 = vadd.f32 %v1132, %v1149
        %v1151 = vpop.f32.mrf.mxu0
        %v1152 = vadd.f32 %v1132, %v1151
        %1153 = vdwg.mxu0
        %v1154 = vadd.f32 %v859, %v1150
        %v1155 = vadd.f32 %v860, %v1152
        %v1156 = vld [vmem:[%s693] sm:$0x1]
        %v1157 = vld [vmem:[%s702] sm:$0x1]
        %v1158 = vsel %vm867, %v1154, 0.0
        %1159 = vadd.xlane.f32.xlu0 %v1158
        %v1160 = vpop.xlane.xlu0 %1159
        %v1161 = vsel %vm867, %v1155, 0.0
        %1162 = vadd.xlane.f32.xlu0 %v1161
        %v1163 = vpop.xlane.xlu0 %1162
        %v1164 = vrcp.pop 8.0
        %v1165 = vmul.f32 8.0, %v1164
        %v1166 = vsub.f32 1.0, %v1165
        %v1167 = vmul.f32 %v1164, %v1166
        %v1168 = vadd.f32 %v1164, %v1167
        %vm1169 = vweird.f32 %v1164
        %v1170 = vsel %vm1169, %v1164, %v1168
        %v1171 = vmul.f32 %v1160, %v1170
        %v1172 = vmul.f32 %v1163, %v1170
        %v1173 = vsub.f32 %v1154, %v1171
        %v1174 = vsub.f32 %v1155, %v1172
        %v1175 = vmul.f32 %v1173, %v1173
        %v1176 = vmul.f32 %v1174, %v1174
        %v1177 = vsel %vm867, %v1175, 0.0
        %1178 = vadd.xlane.f32.xlu0 %v1177
        %v1179 = vpop.xlane.xlu0 %1178
        %v1180 = vsel %vm867, %v1176, 0.0
        %1181 = vadd.xlane.f32.xlu0 %v1180
        %v1182 = vpop.xlane.xlu0 %1181
        %v1183 = vmul.f32 %v1179, %v1170
        %v1184 = vmul.f32 %v1182, %v1170
        %v1185 = vadd.f32 %v1183, 1e-05
        %v1186 = vadd.f32 %v1184, 1e-05
        %v1187 = vrsqrt.pop %v1185
        %v1188 = vmul.f32 %v1187, %v1185
        %v1189 = vmul.f32 %v1188, %v1187
        %v1190 = vmul.f32 0.5, %v1189
        %v1191 = vsub.f32 1.5, %v1190
        %v1192 = vmul.f32 %v1187, %v1191
        %vm1193 = vweird.f32 %v1185
        %vm1194 = vweird.f32 %v1187
        %vm1195 = vmor %vm1193, %vm1194
        %v1196 = vsel %vm1195, %v1187, %v1192
        %v1197 = vrsqrt.pop %v1186
        %v1198 = vmul.f32 %v1197, %v1186
        %v1199 = vmul.f32 %v1198, %v1197
        %v1200 = vmul.f32 0.5, %v1199
        %v1201 = vsub.f32 1.5, %v1200
        %v1202 = vmul.f32 %v1197, %v1201
        %vm1203 = vweird.f32 %v1186
        %vm1204 = vweird.f32 %v1197
        %vm1205 = vmor %vm1203, %vm1204
        %v1206 = vsel %vm1205, %v1197, %v1202
        %v1207 = vmul.f32 %v1173, %v1196
        %v1208 = vmul.f32 %v1174, %v1206
        %v1210 = vperm.slane %v1156, 0
        %v1212 = vmul.f32 %v1207, %v1210
        %v1213 = vmul.f32 %v1208, %v1210
        %v1215 = vperm.slane %v1157, 0
        %v1217 = vadd.f32 %v1212, %v1215
        %v1218 = vadd.f32 %v1213, %v1215
        %v1219 = vpack.c.bf16 %v1218, %v1217
        %v1220 = vld [vmem:[%s712] sm:$0xf]
        %v1221 = vld [vmem:[%s721] sm:$0x1]
        %v1223 = vperm.slane %v1221, 0
        %v1226 = vsel %vm867, %v1219, 0
        %v1229 = vsel %vm871, %v1220, 0
        %1231 = vmatpush.bf16.msra.mxu0 0
        %1232 = vmatpush.bf16.msra.mxu0 0
        %1233 = vmatpush.bf16.msra.mxu0 0
        %1234 = vmatpush.bf16.msra.mxu0 0
        %1235 = vmatpush.bf16.msra.mxu0 0
        %1236 = vmatpush.bf16.msra.mxu0 0
        %1237 = vmatpush.bf16.msra.mxu0 0
        %1238 = vmatpush.bf16.msra.mxu0 %v1229
        %1239 = vmatmul.bf16.gmra.mxu0 %v1226
        %v1240 = vpop.f32.mrf.mxu0
        %v1241 = vadd.f32 %v1223, %v1240
        %v1242 = vpop.f32.mrf.mxu0
        %v1243 = vadd.f32 %v1223, %v1242
        %1244 = vdwg.mxu0
        %v1245 = vmax.f32 %v1241, 0.0
        %v1246 = vmax.f32 %v1243, 0.0
        %v1247 = vpack.c.bf16 %v1246, %v1245
        %v1248 = vld [vmem:[%s836] sm:$0xf]
        %v1249 = vld [vmem:[%s836 + $0x4] sm:$0xf]
        %v1250 = vld [vmem:[%s836 + $0x8] sm:$0xf]
        %v1251 = vld [vmem:[%s836 + $0xc] sm:$0xf]
        %v1252 = vld [vmem:[%s839] sm:$0x1]
        %v1254 = vperm.slane %v1252, 0
        %v1260 = vunpack.c.l.b16 %v1248
        %v1261 = vunpack.c.l.b16 %v1249
        %v1262 = vunpack.c.l.b16 %v1250
        %v1263 = vunpack.c.l.b16 %v1251
        %v1264 = vpack.c.b16 %v1261, %v1260
        %v1265 = vpack.c.b16 %v1263, %v1262
        %vm1268 = vcmask 261120
        %v1270 = vsel %vm1268, %v1247, 0
        %1272 = vmatpush.bf16.msra.mxu0 0
        %1273 = vmatpush.bf16.msra.mxu0 0
        %1274 = vmatpush.bf16.msra.mxu0 0
        %1275 = vmatpush.bf16.msra.mxu0 0
        %1276 = vmatpush.bf16.msra.mxu0 0
        %1277 = vmatpush.bf16.msra.mxu0 0
        %1278 = vmatpush.bf16.msra.mxu0 %v1265
        %1279 = vmatpush.bf16.msra.mxu0 %v1264
        %1280 = vmatmul.bf16.gmra.mxu0 %v1270
        %v1281 = vpop.f32.mrf.mxu0
        %v1282 = vadd.f32 %v1254, %v1281
        %v1283 = vpop.f32.mrf.mxu0
        %v1284 = vadd.f32 %v1254, %v1283
        %1285 = vdwg.mxu0
        %v1286 = vadd.f32 %v1217, %v1282
        %v1287 = vadd.f32 %v1218, %v1284
        %v1288 = vld [vmem:[%s730] sm:$0x1]
        %v1289 = vld [vmem:[%s842] sm:$0x1]
        %v1290 = vsel %vm867, %v1286, 0.0
        %1291 = vadd.xlane.f32.xlu0 %v1290
        %v1292 = vpop.xlane.xlu0 %1291
        %v1293 = vsel %vm867, %v1287, 0.0
        %1294 = vadd.xlane.f32.xlu0 %v1293
        %v1295 = vpop.xlane.xlu0 %1294
        %v1296 = vmul.f32 %v1292, %v1170
        %v1297 = vmul.f32 %v1295, %v1170
        %v1298 = vsub.f32 %v1286, %v1296
        %v1299 = vsub.f32 %v1287, %v1297
        %v1300 = vmul.f32 %v1298, %v1298
        %v1301 = vmul.f32 %v1299, %v1299
        %v1302 = vsel %vm867, %v1300, 0.0
        %1303 = vadd.xlane.f32.xlu0 %v1302
        %v1304 = vpop.xlane.xlu0 %1303
        %v1305 = vsel %vm867, %v1301, 0.0
        %1306 = vadd.xlane.f32.xlu0 %v1305
        %v1307 = vpop.xlane.xlu0 %1306
        %v1308 = vmul.f32 %v1304, %v1170
        %v1309 = vmul.f32 %v1307, %v1170
        %v1310 = vadd.f32 %v1308, 1e-05
        %v1311 = vadd.f32 %v1309, 1e-05
        %v1312 = vrsqrt.pop %v1310
        %v1313 = vmul.f32 %v1312, %v1310
        %v1314 = vmul.f32 %v1313, %v1312
        %v1315 = vmul.f32 0.5, %v1314
        %v1316 = vsub.f32 1.5, %v1315
        %v1317 = vmul.f32 %v1312, %v1316
        %vm1318 = vweird.f32 %v1310
        %vm1319 = vweird.f32 %v1312
        %vm1320 = vmor %vm1318, %vm1319
        %v1321 = vsel %vm1320, %v1312, %v1317
        %v1322 = vrsqrt.pop %v1311
        %v1323 = vmul.f32 %v1322, %v1311
        %v1324 = vmul.f32 %v1323, %v1322
        %v1325 = vmul.f32 0.5, %v1324
        %v1326 = vsub.f32 1.5, %v1325
        %v1327 = vmul.f32 %v1322, %v1326
        %vm1328 = vweird.f32 %v1311
        %vm1329 = vweird.f32 %v1322
        %vm1330 = vmor %vm1328, %vm1329
        %v1331 = vsel %vm1330, %v1322, %v1327
        %v1332 = vmul.f32 %v1298, %v1321
        %v1333 = vmul.f32 %v1299, %v1331
        %v1335 = vperm.slane %v1288, 0
        %v1337 = vmul.f32 %v1332, %v1335
        %v1338 = vmul.f32 %v1333, %v1335
        %v1340 = vperm.slane %v1289, 0
        %v1342 = vadd.f32 %v1337, %v1340
        %v1343 = vadd.f32 %v1338, %v1340
        %1344 = vst.msk [vmem:[#allocation2] sm:$0xff] %vm867, %v1342
        %1345 = vst.msk [vmem:[#allocation2 + $0x8] sm:$0xff] %vm867, %v1343
        %p1346 = scmp.eq.s32.totalorder %s48, 1
        // Predicated region
        $region117: #{tpu_custom_call.1} parent=75 // pred_check
          %p1347 = pneg %p1346
        $region118: #{tpu_custom_call.1} parent=75 // pred_check_branch
          %1349 = sbr.rel (%p1347) target = $region120
        $region119: #{tpu_custom_call.1} parent=75 // pred_region
          %1350 = vst.msk [vmem:[%s825] sm:$0xff] %vm867, %v1342
          %1351 = vst.msk [vmem:[%s825 + $0x8] sm:$0xff] %vm867, %v1343
        $region120: #{tpu_custom_call.1} parent=75 // pred_fallthru
          _
        %s1352 = sand.u32 %s422, 1
        %s1353 = scalar_lea.sflag [#allocation5], %s1352
        %s1354 = sand.u32 %s422, 1
        %s1355 = smul.addr %s1354, 16
        %s1356 = scalar_lea.vmem [#allocation18], %s1355
        // Predicated region
        $region121: #{tpu_custom_call.1} parent=75 // pred_check
          %p1357 = pneg %p432
        $region122: #{tpu_custom_call.1} parent=75 // pred_check_branch
          %1359 = sbr.rel (%p1357) target = $region124
        $region123: #{tpu_custom_call.1} parent=75 // pred_region
          %s1360 = smul.u32 2, %s47
          %1362 = vsyncadd %s1353, 0
          %s1363 = smul.addr %s1360, 8
          %s1364 = scalar_lea.hbm %s14, %s1363
          %s1365 = sshll.u32 %s1356, 4
          %s1366 = int_to_ptr.vmem [resolvable:$true] %s1365
          %s1367 = sshll.u32 %s1364, 4
          %s1368 = int_to_ptr.hbm [resolvable:$true] %s1367
          %1373 = dma.vmem_to_hbm [thread:$0]  %s1366, 256, %s1368, %s1353, 128, 128, 8
        $region124: #{tpu_custom_call.1} parent=75 // pred_fallthru
          _
      $region76: #{tpu_custom_call.1} parent=5 // pred_fallthru
        _
      %p1374 = scmp.le.s32.totalorder 2, %s38
      // Predicated region
      $region125: #{tpu_custom_call.1} parent=5 // pred_check
        %p1375 = pneg %p1374
      $region126: #{tpu_custom_call.1} parent=5 // pred_check_branch
        %1377 = sbr.rel (%p1375) target = $region128
      $region127: #{tpu_custom_call.1} parent=5 // pred_region
        %s1378 = ssub.s32 %s38, 2
        // Predicated region
        $region129: #{tpu_custom_call.1} parent=127 // pred_check
          %p1379 = pneg %p438
        $region130: #{tpu_custom_call.1} parent=127 // pred_check_branch
          %1381 = sbr.rel (%p1379) target = $region132
        $region131: #{tpu_custom_call.1} parent=127 // pred_region
          %s1382 = sand.u32 %s423, 1
          %s1383 = scalar_lea.sflag [#allocation5], %s1382
          %s1384 = sand.u32 %s423, 1
          %s1385 = smul.addr %s1384, 16
          %s1386 = scalar_lea.vmem [#allocation18], %s1385
          %1388 = dma.done %s1383, 256
        $region132: #{tpu_custom_call.1} parent=127 // pred_fallthru
          _
      $region128: #{tpu_custom_call.1} parent=5 // pred_fallthru
        _
    $region6: #{tpu_custom_call.1} parent=1 // loop_footer
      %s42 = sadd.s32 1, %s38
    $region7: #{tpu_custom_call.1} parent=1 // loop_footer_branch
      %37 = sbr.rel target = $region3
    $region8: #{tpu_custom_call.1} parent=1 // loop_exit
      _
    %1389 = vsyncpa [#allocation4], 1
    %s1390 = scalar_lea.sflag [#allocation4], 1
    %1391 = vsyncpa %s1390, 1
    %1392 = vsyncpa [#allocation7], 1
    %s1393 = scalar_lea.sflag [#allocation7], 1
    %1394 = vsyncpa %s1393, 1
    %1395 = vsyncpa [#allocation10], 1
    %s1396 = scalar_lea.sflag [#allocation10], 1
    %1397 = vsyncpa %s1396, 1
    %1398 = vsyncpa [#allocation13], 1
    %s1399 = scalar_lea.sflag [#allocation13], 1
    %1400 = vsyncpa %s1399, 1
    %1401 = vsyncpa [#allocation16], 1
    %s1402 = scalar_lea.sflag [#allocation16], 1
    %1403 = vsyncpa %s1402, 1
    %1404 = vsyncpa [#allocation5], 1
    %s1405 = scalar_lea.sflag [#allocation5], 1
    %1406 = vsyncpa %s1405, 1

</llo_original>
